<compile_context>
chip_gen: v7x
topology: tpu7x:2x2x1
jax: 0.10.0
libtpu: 0.0.40
codegen_flags: <defaults>
</compile_context>

<pallas_src>
import functools

import jax
import jax.numpy as jnp
from jax.experimental import pallas as pl
from jax.experimental.pallas import tpu as pltpu


# ----------------------------- small helpers ---------------------------------------


def _round_up(n, m):
    return ((n + m - 1) // m) * m


def _largest_divisor_leq(n, cap):
    cap = max(1, min(n, cap))
    for d in range(cap, 0, -1):
        if n % d == 0:
            return d
    return 1


def _pad_gate_rows(w, H, H_pad, pad_cols_to=None):
    """Pad an nn.LSTM weight (4H, D) per gate block (i, f, g, o) to (4*H_pad, D[_pad])."""
    D = w.shape[1]
    w = w.reshape(4, H, D)
    w = jnp.pad(w, ((0, 0), (0, H_pad - H), (0, 0)))
    if pad_cols_to is not None and pad_cols_to > D:
        w = jnp.pad(w, ((0, 0), (0, 0), (0, pad_cols_to - D)))
    return w.reshape(4 * H_pad, -1)


def _pad_gate_vec(b, H, H_pad):
    b = b.reshape(4, H)
    b = jnp.pad(b, ((0, 0), (0, H_pad - H)))
    return b.reshape(4 * H_pad)


# --------------------------------- kernel ------------------------------------------


def _fused_lstm_kernel(num_layers, *refs):
    """All LSTM layers fused; one time chunk per grid step.

    refs layout (inputs, output, scratch):
      gates0_ref : (Tc, B, 4H)  layer-0 pre-activations  x @ W_ih0.T + (b_ih0 + b_hh0)
      whh0_ref   : (H, 4H)      layer-0 hidden->hidden, pre-transposed
      then for each layer l = 1..L-1:
        wih_ref  : (H, 4H)      W_ih_l.T   (input projection, hoisted per chunk)
        whh_ref  : (H, 4H)      W_hh_l.T
        b_ref    : (1, 4H)      b_ih_l + b_hh_l
      out_ref    : (Tc, B, H)   final-layer hidden states for this chunk
      h_carry    : (L, B, H) f32  per-layer h, persists across time chunks
      c_carry    : (L, B, H) f32  per-layer c, persists across time chunks
      h_seq      : (Tc, B, H)   previous layer's hidden chunk     (only if L > 1)
      gates_buf  : (Tc, B, 4H) f32  hoisted input-projection gates (only if L > 1)
    """
    n_in = 2 + 3 * (num_layers - 1)
    gates0_ref, whh0_ref = refs[0], refs[1]
    layer_refs = refs[2:n_in]
    out_ref = refs[n_in]
    scratch = refs[n_in + 1:]
    h_carry, c_carry = scratch[0], scratch[1]
    h_seq = scratch[2] if num_layers > 1 else None
    gates_buf = scratch[3] if num_layers > 1 else None

    Tc, B, four_h = gates0_ref.shape
    H = four_h // 4
    f32 = jnp.float32
    cdt = whh0_ref.dtype            # MXU operand dtype (f32 or bf16)
    unroll = min(Tc, 8)             # bounded partial unroll (LLO visibility w/o blowup)

    # Zero the recurrent state at the first time chunk of each batch shard.
    @pl.when(pl.program_id(1) == 0)
    def _init():
        h_carry[...] = jnp.zeros_like(h_carry)
        c_carry[...] = jnp.zeros_like(c_carry)

    def lstm_cell(gates, c):
        # PyTorch gate order: i, f, g, o  (all slices lane-aligned since H % 128 == 0)
        i_g = jax.nn.sigmoid(gates[:, 0 * H:1 * H])
        f_g = jax.nn.sigmoid(gates[:, 1 * H:2 * H])
        g_g = jnp.tanh(gates[:, 2 * H:3 * H])
        o_g = jax.nn.sigmoid(gates[:, 3 * H:4 * H])
        c_new = f_g * c + i_g * g_g
        h_new = o_g * jnp.tanh(c_new)
        return h_new, c_new

    # ---- Layer 0: input projection + bias already folded into gates0 (done in XLA) ----
    whh0 = whh0_ref[...]
    last0 = (num_layers == 1)

    def step0(t, carry, last=last0, whh=whh0):
        h, c = carry
        g = gates0_ref[t].astype(f32) + jnp.dot(
            h.astype(cdt), whh, preferred_element_type=f32)
        h_new, c_new = lstm_cell(g, c)
        if last:
            out_ref[t] = h_new.astype(out_ref.dtype)
        else:
            h_seq[t] = h_new.astype(h_seq.dtype)
        return h_new, c_new

    h0 = h_carry[0]
    c0 = c_carry[0]
    hT, cT = jax.lax.fori_loop(0, Tc, step0, (h0, c0), unroll=unroll)
    h_carry[0] = hT
    c_carry[0] = cT

    # ---- Layers 1..L-1: hoisted chunk input projection + tiny recurrent matmul ----
    for layer in range(1, num_layers):
        wih_ref, whh_ref, b_ref = layer_refs[3 * (layer - 1): 3 * layer]
        last = (layer == num_layers - 1)

        # One (Tc*B, H) @ (H, 4H) MXU matmul per chunk; bias added once (not per step).
        src = h_seq[...].reshape(Tc * B, H)
        gates_in = jnp.dot(src, wih_ref[...], preferred_element_type=f32)
        gates_in = gates_in + b_ref[...].astype(f32)
        gates_buf[...] = gates_in.reshape(Tc, B, 4 * H)

        whh = whh_ref[...]

        def step(t, carry, last=last, whh=whh):
            h, c = carry
            g = gates_buf[t] + jnp.dot(h.astype(cdt), whh, preferred_element_type=f32)
            h_new, c_new = lstm_cell(g, c)
            if last:
                out_ref[t] = h_new.astype(out_ref.dtype)
            else:
                # h_seq's old contents were fully consumed into gates_buf above,
                # so overwriting it in place is safe.
                h_seq[t] = h_new.astype(h_seq.dtype)
            return h_new, c_new

        h0 = h_carry[layer]
        c0 = c_carry[layer]
        hT, cT = jax.lax.fori_loop(0, Tc, step, (h0, c0), unroll=unroll)
        h_carry[layer] = hT
        c_carry[layer] = cT


# -------------------------------- wrapper -------------------------------------------


def lstm_forward(x, params, *, t_chunk=None, compute_dtype=jnp.float32):
    """Equivalent of LSTM.forward: x (T, B, D) -> lstm_out (T, B, H).

    NOTE: the PyTorch module's self.linear is never applied in forward(), so it is
    not applied here either.
    """
    f32 = jnp.float32
    T, B, D = x.shape
    L = len(params)
    H = params[0]["w_hh"].shape[1]

    # Hardware-tile padding: sublane-dense batch, lane-dense hidden (per gate block).
    H_pad = _round_up(H, 128)
    B_pad = _round_up(B, 8)
    n_bshard = 2 if (B_pad % 16 == 0) else 1          # engages both v7x TCs when B >= 16
    B_tile = B_pad // n_bshard

    if t_chunk is None:
        t_chunk = _largest_divisor_leq(T, 64)
    assert T % t_chunk == 0, "t_chunk must divide T"
    n_tchunk = T // t_chunk

    # ---- Layer-0 input projection hoisted to XLA: one (T*B, D) @ (D, 4H) matmul ----
    p0 = params[0]
    w_ih0 = _pad_gate_rows(p0["w_ih"].astype(f32), H, H_pad)          # (4H_pad, D)
    b0 = _pad_gate_vec((p0["b_ih"] + p0["b_hh"]).astype(f32), H, H_pad)
    x_p = jnp.pad(x.astype(f32), ((0, 0), (0, B_pad - B), (0, 0)))
    gates0 = (x_p.reshape(T * B_pad, D) @ w_ih0.T + b0).reshape(T, B_pad, 4 * H_pad)
    gates0 = gates0.astype(compute_dtype)

    whh0_t = _pad_gate_rows(p0["w_hh"].astype(f32), H, H_pad,
                            pad_cols_to=H_pad).T.astype(compute_dtype)  # (H_pad, 4H_pad)

    args = [gates0, whh0_t]
    in_specs = [
        pl.BlockSpec((t_chunk, B_tile, 4 * H_pad), lambda b, t: (t, b, 0)),
        pl.BlockSpec((H_pad, 4 * H_pad), lambda b, t: (0, 0)),
    ]
    for p in params[1:]:
        wih_t = _pad_gate_rows(p["w_ih"].astype(f32), H, H_pad,
                               pad_cols_to=H_pad).T.astype(compute_dtype)
        whh_t = _pad_gate_rows(p["w_hh"].astype(f32), H, H_pad,
                               pad_cols_to=H_pad).T.astype(compute_dtype)
        b = _pad_gate_vec((p["b_ih"] + p["b_hh"]).astype(f32), H, H_pad).reshape(1, -1)
        args += [wih_t, whh_t, b]
        in_specs += [
            pl.BlockSpec((H_pad, 4 * H_pad), lambda b, t: (0, 0)),
            pl.BlockSpec((H_pad, 4 * H_pad), lambda b, t: (0, 0)),
            pl.BlockSpec((1, 4 * H_pad), lambda b, t: (0, 0)),
        ]

    scratch_shapes = [
        pltpu.VMEM((L, B_tile, H_pad), f32),            # h carry (persists over chunks)
        pltpu.VMEM((L, B_tile, H_pad), f32),            # c carry
    ]
    if L > 1:
        scratch_shapes += [
            pltpu.VMEM((t_chunk, B_tile, H_pad), compute_dtype),      # lower-layer h chunk
            pltpu.VMEM((t_chunk, B_tile, 4 * H_pad), f32),            # hoisted gates chunk
        ]

    # Explicit VMEM budget sized from the actual resident footprint (v7x-safe cap).
    csz = jnp.dtype(compute_dtype).itemsize
    needed = 0
    needed += 2 * t_chunk * B_tile * 4 * H_pad * csz               # gates0 chunk (x2 bufs)
    needed += 2 * t_chunk * B_tile * H_pad * 4                     # out chunk   (x2 bufs)
    needed += 2 * H_pad * 4 * H_pad * csz                          # whh0
    needed += (L - 1) * (2 * (2 * H_pad * 4 * H_pad * csz) + 2 * 4 * H_pad * 4)
    needed += 2 * L * B_tile * H_pad * 4                           # h/c carries
    if L > 1:
        needed += t_chunk * B_tile * H_pad * csz                   # h_seq
        needed += t_chunk * B_tile * 4 * H_pad * 4                 # gates_buf
    vmem_limit = int(min(max(2 * needed + (4 << 20), 32 << 20), 64 << 20))

    out = pl.pallas_call(
        functools.partial(_fused_lstm_kernel, L),
        out_shape=jax.ShapeDtypeStruct((T, B_pad, H_pad), f32),
        grid=(n_bshard, n_tchunk),
        in_specs=in_specs,
        out_specs=pl.BlockSpec((t_chunk, B_tile, H_pad), lambda b, t: (t, b, 0)),
        scratch_shapes=scratch_shapes,
        compiler_params=pltpu.CompilerParams(
            dimension_semantics=("parallel", "arbitrary"),
            vmem_limit_bytes=vmem_limit),
    )(*args)

    return out[:, :B, :H]


# ------------------------------ init & reference ------------------------------------


def init_lstm_params(key, input_dim, hidden_dim, num_layers):
    """Deterministic init mirroring nn.LSTM parameter shapes (gate order i, f, g, o)."""
    params = []
    k = 1.0 / jnp.sqrt(hidden_dim)
    for layer in range(num_layers):
        d_in = input_dim if layer == 0 else hidden_dim
        key, k1, k2, k3, k4 = jax.random.split(key, 5)
        params.append(dict(
            w_ih=jax.random.uniform(k1, (4 * hidden_dim, d_in), jnp.float32, -k, k),
            w_hh=jax.random.uniform(k2, (4 * hidden_dim, hidden_dim), jnp.float32, -k, k),
            b_ih=jax.random.uniform(k3, (4 * hidden_dim,), jnp.float32, -k, k),
            b_hh=jax.random.uniform(k4, (4 * hidden_dim,), jnp.float32, -k, k),
        ))
    return params


def lstm_forward_ref(x, params):
    """Pure-JAX reference (lax.scan) for correctness checking."""
    h = x.astype(jnp.float32)
    for p in params:
        H = p["w_hh"].shape[1]
        B = h.shape[1]
        bias = p["b_ih"] + p["b_hh"]

        def step(carry, x_t, p=p, bias=bias, H=H):
            h_t, c_t = carry
            gates = x_t @ p["w_ih"].T + h_t @ p["w_hh"].T + bias
            i_g = jax.nn.sigmoid(gates[:, 0 * H:1 * H])
            f_g = jax.nn.sigmoid(gates[:, 1 * H:2 * H])
            g_g = jnp.tanh(gates[:, 2 * H:3 * H])
            o_g = jax.nn.sigmoid(gates[:, 3 * H:4 * H])
            c_n = f_g * c_t + i_g * g_g
            h_n = o_g * jnp.tanh(c_n)
            return (h_n, c_n), h_n

        init = (jnp.zeros((B, H), jnp.float32), jnp.zeros((B, H), jnp.float32))
        _, h = jax.lax.scan(step, init, h)
    return h


if __name__ == "__main__":
    # Small shapes consistent with the module: seq=8, batch=2, input_dim=4, hidden=32, 2 layers.
    SEQ, BATCH, INPUT_DIM, HIDDEN_DIM, NUM_LAYERS = 8, 2, 4, 32, 2

    key = jax.random.PRNGKey(0)
    key, xk = jax.random.split(key)
    x = jax.random.normal(xk, (SEQ, BATCH, INPUT_DIM), dtype=jnp.float32)
    params = init_lstm_params(key, INPUT_DIM, HIDDEN_DIM, NUM_LAYERS)

    ref = lstm_forward_ref(x, params)

    # f32 MXU operands, 2 time chunks (exercises the persistent h/c carry across chunks).
    out = jax.block_until_ready(
        lstm_forward(x, params, t_chunk=4, compute_dtype=jnp.float32))
    assert out.shape == (SEQ, BATCH, HIDDEN_DIM)
    assert jnp.allclose(out, ref, atol=1e-4, rtol=1e-4), "Pallas LSTM (f32) mismatch"

    # bf16 MXU operands (gates0 / weights / h), gate math kept in f32.
    out_bf16 = jax.block_until_ready(
        lstm_forward(x, params, t_chunk=4, compute_dtype=jnp.bfloat16))
    assert jnp.allclose(out_bf16, ref, atol=5e-2, rtol=5e-2), "Pallas LSTM (bf16) mismatch"

    print("KERNEL_OK")
</pallas_src>

<mosaic_0001>
module attributes {stable_mosaic.version = 11 : i64} {
  func.func @_fused_lstm_kernel(%arg0: i32, %arg1: i32, %arg2: memref<4x8x512xf32, #tpu.memory_space<vmem>>, %arg3: memref<128x512xf32, #tpu.memory_space<vmem>>, %arg4: memref<128x512xf32, #tpu.memory_space<vmem>>, %arg5: memref<128x512xf32, #tpu.memory_space<vmem>>, %arg6: memref<1x512xf32, #tpu.memory_space<vmem>>, %arg7: memref<4x8x128xf32, #tpu.memory_space<vmem>>, %arg8: memref<2x8x128xf32, #tpu.memory_space<vmem>>, %arg9: memref<2x8x128xf32, #tpu.memory_space<vmem>>, %arg10: memref<4x8x128xf32, #tpu.memory_space<vmem>>, %arg11: memref<4x8x512xf32, #tpu.memory_space<vmem>>) attributes {dimension_semantics = [#tpu.dimension_semantics<parallel>, #tpu.dimension_semantics<arbitrary>], iteration_bounds = array<i64: 1, 2>, scalar_prefetch = 0 : i64, scratch_operands = 4 : i64, tpu.core_type = #tpu.core_type<tc>, window_params = [{transform_indices = @transform_0, window_bounds = array<i64: 4, 8, 512>}, {pipeline_mode = #tpu.pipeline_mode<synchronous>, transform_indices = @transform_1, window_bounds = array<i64: 128, 512>}, {pipeline_mode = #tpu.pipeline_mode<synchronous>, transform_indices = @transform_2, window_bounds = array<i64: 128, 512>}, {pipeline_mode = #tpu.pipeline_mode<synchronous>, transform_indices = @transform_3, window_bounds = array<i64: 128, 512>}, {pipeline_mode = #tpu.pipeline_mode<synchronous>, transform_indices = @transform_4, window_bounds = array<i64: 1, 512>}, {transform_indices = @transform_5, window_bounds = array<i64: 4, 8, 128>}]} {
    %c0_i32 = arith.constant 0 : i32
    %0 = arith.cmpi eq, %arg1, %c0_i32 : i32
    %1 = arith.extui %0 : i1 to i32
    %c0_i32_0 = arith.constant 0 : i32
    %2 = arith.cmpi ne, %1, %c0_i32_0 : i32
    scf.if %2 {
      %cst_107 = arith.constant 0.000000e+00 : f32
      %306 = vector.broadcast %cst_107 : f32 to vector<2x8x128xf32>
      %c0_108 = arith.constant 0 : index
      %c0_109 = arith.constant 0 : index
      %c0_110 = arith.constant 0 : index
      %307 = vector.load %arg8[%c0_108, %c0_109, %c0_110] : memref<2x8x128xf32, #tpu.memory_space<vmem>>, vector<2x8x128xf32>
      tpu.vector_store %arg8[%c0_108, %c0_109, %c0_110], %306 {strides = array<i32>} : memref<2x8x128xf32, #tpu.memory_space<vmem>>, vector<2x8x128xf32>,
      %cst_111 = arith.constant 0.000000e+00 : f32
      %308 = vector.broadcast %cst_111 : f32 to vector<2x8x128xf32>
      %c0_112 = arith.constant 0 : index
      %c0_113 = arith.constant 0 : index
      %c0_114 = arith.constant 0 : index
      %309 = vector.load %arg9[%c0_112, %c0_113, %c0_114] : memref<2x8x128xf32, #tpu.memory_space<vmem>>, vector<2x8x128xf32>
      tpu.vector_store %arg9[%c0_112, %c0_113, %c0_114], %308 {strides = array<i32>} : memref<2x8x128xf32, #tpu.memory_space<vmem>>, vector<2x8x128xf32>,
    } else {
    }
    %c0 = arith.constant 0 : index
    %c0_1 = arith.constant 0 : index
    %3 = vector.load %arg3[%c0, %c0_1] : memref<128x512xf32, #tpu.memory_space<vmem>>, vector<128x512xf32>
    %c0_2 = arith.constant 0 : index
    %c0_3 = arith.constant 0 : index
    %c0_4 = arith.constant 0 : index
    %4 = vector.load %arg8[%c0_2, %c0_3, %c0_4] : memref<2x8x128xf32, #tpu.memory_space<vmem>>, vector<1x8x128xf32>
    %5 = vector.shape_cast %4 : vector<1x8x128xf32> to vector<8x128xf32>
    %c0_5 = arith.constant 0 : index
    %c0_6 = arith.constant 0 : index
    %c0_7 = arith.constant 0 : index
    %6 = vector.load %arg9[%c0_5, %c0_6, %c0_7] : memref<2x8x128xf32, #tpu.memory_space<vmem>>, vector<1x8x128xf32>
    %7 = vector.shape_cast %6 : vector<1x8x128xf32> to vector<8x128xf32>
    %c0_i32_8 = arith.constant 0 : i32
    %8 = arith.index_cast %c0_i32_8 : i32 to index
    %c0_9 = arith.constant 0 : index
    %c0_10 = arith.constant 0 : index
    %9 = vector.load %arg2[%8, %c0_9, %c0_10] : memref<4x8x512xf32, #tpu.memory_space<vmem>>, vector<1x8x512xf32>
    %10 = vector.shape_cast %9 : vector<1x8x512xf32> to vector<8x512xf32>
    %cst = arith.constant dense<0.000000e+00> : vector<8x512xf32>
    %11 = tpu.matmul %5, %3, %cst {dimension_numbers = #tpu.dot_dimension_numbers<[1], [0], [0], [1], [0, 0, 1, 1], [], []>} : vector<8x128xf32>, vector<128x512xf32>, vector<8x512xf32> -> vector<8x512xf32>
    %12 = arith.addf %10, %11 : vector<8x512xf32>
    %13 = vector.extract_strided_slice %12 {offsets = [0, 0], sizes = [8, 128], strides = [1, 1]} : vector<8x512xf32> to vector<8x128xf32>
    %14 = arith.negf %13 : vector<8x128xf32>
    %15 = math.exp %14 : vector<8x128xf32>
    %cst_11 = arith.constant 1.000000e+00 : f32
    %16 = vector.broadcast %cst_11 : f32 to vector<8x128xf32>
    %17 = arith.addf %16, %15 : vector<8x128xf32>
    %18 = arith.divf %16, %17 : vector<8x128xf32>
    %19 = vector.extract_strided_slice %12 {offsets = [0, 128], sizes = [8, 128], strides = [1, 1]} : vector<8x512xf32> to vector<8x128xf32>
    %20 = arith.negf %19 : vector<8x128xf32>
    %21 = math.exp %20 : vector<8x128xf32>
    %cst_12 = arith.constant 1.000000e+00 : f32
    %22 = vector.broadcast %cst_12 : f32 to vector<8x128xf32>
    %23 = arith.addf %22, %21 : vector<8x128xf32>
    %24 = arith.divf %22, %23 : vector<8x128xf32>
    %25 = vector.extract_strided_slice %12 {offsets = [0, 256], sizes = [8, 128], strides = [1, 1]} : vector<8x512xf32> to vector<8x128xf32>
    %26 = math.tanh %25 : vector<8x128xf32>
    %27 = vector.extract_strided_slice %12 {offsets = [0, 384], sizes = [8, 128], strides = [1, 1]} : vector<8x512xf32> to vector<8x128xf32>
    %28 = arith.negf %27 : vector<8x128xf32>
    %29 = math.exp %28 : vector<8x128xf32>
    %cst_13 = arith.constant 1.000000e+00 : f32
    %30 = vector.broadcast %cst_13 : f32 to vector<8x128xf32>
    %31 = arith.addf %30, %29 : vector<8x128xf32>
    %32 = arith.divf %30, %31 : vector<8x128xf32>
    %33 = arith.mulf %24, %7 : vector<8x128xf32>
    %34 = arith.mulf %18, %26 : vector<8x128xf32>
    %35 = arith.addf %33, %34 : vector<8x128xf32>
    %36 = math.tanh %35 : vector<8x128xf32>
    %37 = arith.mulf %32, %36 : vector<8x128xf32>
    %38 = arith.index_cast %c0_i32_8 : i32 to index
    %c0_14 = arith.constant 0 : index
    %c0_15 = arith.constant 0 : index
    %39 = vector.load %arg10[%38, %c0_14, %c0_15] : memref<4x8x128xf32, #tpu.memory_space<vmem>>, vector<1x8x128xf32>
    %40 = vector.shape_cast %39 : vector<1x8x128xf32> to vector<8x128xf32>
    %41 = vector.shape_cast %37 : vector<8x128xf32> to vector<1x8x128xf32>
    tpu.vector_store %arg10[%38, %c0_14, %c0_15], %41 {strides = array<i32>} : memref<4x8x128xf32, #tpu.memory_space<vmem>>, vector<1x8x128xf32>,
    %c1_i32 = arith.constant 1 : i32
    %42 = arith.index_cast %c1_i32 : i32 to index
    %c0_16 = arith.constant 0 : index
    %c0_17 = arith.constant 0 : index
    %43 = vector.load %arg2[%42, %c0_16, %c0_17] : memref<4x8x512xf32, #tpu.memory_space<vmem>>, vector<1x8x512xf32>
    %44 = vector.shape_cast %43 : vector<1x8x512xf32> to vector<8x512xf32>
    %cst_18 = arith.constant dense<0.000000e+00> : vector<8x512xf32>
    %45 = tpu.matmul %37, %3, %cst_18 {dimension_numbers = #tpu.dot_dimension_numbers<[1], [0], [0], [1], [0, 0, 1, 1], [], []>} : vector<8x128xf32>, vector<128x512xf32>, vector<8x512xf32> -> vector<8x512xf32>
    %46 = arith.addf %44, %45 : vector<8x512xf32>
    %47 = vector.extract_strided_slice %46 {offsets = [0, 0], sizes = [8, 128], strides = [1, 1]} : vector<8x512xf32> to vector<8x128xf32>
    %48 = arith.negf %47 : vector<8x128xf32>
    %49 = math.exp %48 : vector<8x128xf32>
    %cst_19 = arith.constant 1.000000e+00 : f32
    %50 = vector.broadcast %cst_19 : f32 to vector<8x128xf32>
    %51 = arith.addf %50, %49 : vector<8x128xf32>
    %52 = arith.divf %50, %51 : vector<8x128xf32>
    %53 = vector.extract_strided_slice %46 {offsets = [0, 128], sizes = [8, 128], strides = [1, 1]} : vector<8x512xf32> to vector<8x128xf32>
    %54 = arith.negf %53 : vector<8x128xf32>
    %55 = math.exp %54 : vector<8x128xf32>
    %cst_20 = arith.constant 1.000000e+00 : f32
    %56 = vector.broadcast %cst_20 : f32 to vector<8x128xf32>
    %57 = arith.addf %56, %55 : vector<8x128xf32>
    %58 = arith.divf %56, %57 : vector<8x128xf32>
    %59 = vector.extract_strided_slice %46 {offsets = [0, 256], sizes = [8, 128], strides = [1, 1]} : vector<8x512xf32> to vector<8x128xf32>
    %60 = math.tanh %59 : vector<8x128xf32>
    %61 = vector.extract_strided_slice %46 {offsets = [0, 384], sizes = [8, 128], strides = [1, 1]} : vector<8x512xf32> to vector<8x128xf32>
    %62 = arith.negf %61 : vector<8x128xf32>
    %63 = math.exp %62 : vector<8x128xf32>
    %cst_21 = arith.constant 1.000000e+00 : f32
    %64 = vector.broadcast %cst_21 : f32 to vector<8x128xf32>
    %65 = arith.addf %64, %63 : vector<8x128xf32>
    %66 = arith.divf %64, %65 : vector<8x128xf32>
    %67 = arith.mulf %58, %35 : vector<8x128xf32>
    %68 = arith.mulf %52, %60 : vector<8x128xf32>
    %69 = arith.addf %67, %68 : vector<8x128xf32>
    %70 = math.tanh %69 : vector<8x128xf32>
    %71 = arith.mulf %66, %70 : vector<8x128xf32>
    %72 = arith.index_cast %c1_i32 : i32 to index
    %c0_22 = arith.constant 0 : index
    %c0_23 = arith.constant 0 : index
    %73 = vector.load %arg10[%72, %c0_22, %c0_23] : memref<4x8x128xf32, #tpu.memory_space<vmem>>, vector<1x8x128xf32>
    %74 = vector.shape_cast %73 : vector<1x8x128xf32> to vector<8x128xf32>
    %75 = vector.shape_cast %71 : vector<8x128xf32> to vector<1x8x128xf32>
    tpu.vector_store %arg10[%72, %c0_22, %c0_23], %75 {strides = array<i32>} : memref<4x8x128xf32, #tpu.memory_space<vmem>>, vector<1x8x128xf32>,
    %c2_i32 = arith.constant 2 : i32
    %76 = arith.index_cast %c2_i32 : i32 to index
    %c0_24 = arith.constant 0 : index
    %c0_25 = arith.constant 0 : index
    %77 = vector.load %arg2[%76, %c0_24, %c0_25] : memref<4x8x512xf32, #tpu.memory_space<vmem>>, vector<1x8x512xf32>
    %78 = vector.shape_cast %77 : vector<1x8x512xf32> to vector<8x512xf32>
    %cst_26 = arith.constant dense<0.000000e+00> : vector<8x512xf32>
    %79 = tpu.matmul %71, %3, %cst_26 {dimension_numbers = #tpu.dot_dimension_numbers<[1], [0], [0], [1], [0, 0, 1, 1], [], []>} : vector<8x128xf32>, vector<128x512xf32>, vector<8x512xf32> -> vector<8x512xf32>
    %80 = arith.addf %78, %79 : vector<8x512xf32>
    %81 = vector.extract_strided_slice %80 {offsets = [0, 0], sizes = [8, 128], strides = [1, 1]} : vector<8x512xf32> to vector<8x128xf32>
    %82 = arith.negf %81 : vector<8x128xf32>
    %83 = math.exp %82 : vector<8x128xf32>
    %cst_27 = arith.constant 1.000000e+00 : f32
    %84 = vector.broadcast %cst_27 : f32 to vector<8x128xf32>
    %85 = arith.addf %84, %83 : vector<8x128xf32>
    %86 = arith.divf %84, %85 : vector<8x128xf32>
    %87 = vector.extract_strided_slice %80 {offsets = [0, 128], sizes = [8, 128], strides = [1, 1]} : vector<8x512xf32> to vector<8x128xf32>
    %88 = arith.negf %87 : vector<8x128xf32>
    %89 = math.exp %88 : vector<8x128xf32>
    %cst_28 = arith.constant 1.000000e+00 : f32
    %90 = vector.broadcast %cst_28 : f32 to vector<8x128xf32>
    %91 = arith.addf %90, %89 : vector<8x128xf32>
    %92 = arith.divf %90, %91 : vector<8x128xf32>
    %93 = vector.extract_strided_slice %80 {offsets = [0, 256], sizes = [8, 128], strides = [1, 1]} : vector<8x512xf32> to vector<8x128xf32>
    %94 = math.tanh %93 : vector<8x128xf32>
    %95 = vector.extract_strided_slice %80 {offsets = [0, 384], sizes = [8, 128], strides = [1, 1]} : vector<8x512xf32> to vector<8x128xf32>
    %96 = arith.negf %95 : vector<8x128xf32>
    %97 = math.exp %96 : vector<8x128xf32>
    %cst_29 = arith.constant 1.000000e+00 : f32
    %98 = vector.broadcast %cst_29 : f32 to vector<8x128xf32>
    %99 = arith.addf %98, %97 : vector<8x128xf32>
    %100 = arith.divf %98, %99 : vector<8x128xf32>
    %101 = arith.mulf %92, %69 : vector<8x128xf32>
    %102 = arith.mulf %86, %94 : vector<8x128xf32>
    %103 = arith.addf %101, %102 : vector<8x128xf32>
    %104 = math.tanh %103 : vector<8x128xf32>
    %105 = arith.mulf %100, %104 : vector<8x128xf32>
    %106 = arith.index_cast %c2_i32 : i32 to index
    %c0_30 = arith.constant 0 : index
    %c0_31 = arith.constant 0 : index
    %107 = vector.load %arg10[%106, %c0_30, %c0_31] : memref<4x8x128xf32, #tpu.memory_space<vmem>>, vector<1x8x128xf32>
    %108 = vector.shape_cast %107 : vector<1x8x128xf32> to vector<8x128xf32>
    %109 = vector.shape_cast %105 : vector<8x128xf32> to vector<1x8x128xf32>
    tpu.vector_store %arg10[%106, %c0_30, %c0_31], %109 {strides = array<i32>} : memref<4x8x128xf32, #tpu.memory_space<vmem>>, vector<1x8x128xf32>,
    %c3_i32 = arith.constant 3 : i32
    %110 = arith.index_cast %c3_i32 : i32 to index
    %c0_32 = arith.constant 0 : index
    %c0_33 = arith.constant 0 : index
    %111 = vector.load %arg2[%110, %c0_32, %c0_33] : memref<4x8x512xf32, #tpu.memory_space<vmem>>, vector<1x8x512xf32>
    %112 = vector.shape_cast %111 : vector<1x8x512xf32> to vector<8x512xf32>
    %cst_34 = arith.constant dense<0.000000e+00> : vector<8x512xf32>
    %113 = tpu.matmul %105, %3, %cst_34 {dimension_numbers = #tpu.dot_dimension_numbers<[1], [0], [0], [1], [0, 0, 1, 1], [], []>} : vector<8x128xf32>, vector<128x512xf32>, vector<8x512xf32> -> vector<8x512xf32>
    %114 = arith.addf %112, %113 : vector<8x512xf32>
    %115 = vector.extract_strided_slice %114 {offsets = [0, 0], sizes = [8, 128], strides = [1, 1]} : vector<8x512xf32> to vector<8x128xf32>
    %116 = arith.negf %115 : vector<8x128xf32>
    %117 = math.exp %116 : vector<8x128xf32>
    %cst_35 = arith.constant 1.000000e+00 : f32
    %118 = vector.broadcast %cst_35 : f32 to vector<8x128xf32>
    %119 = arith.addf %118, %117 : vector<8x128xf32>
    %120 = arith.divf %118, %119 : vector<8x128xf32>
    %121 = vector.extract_strided_slice %114 {offsets = [0, 128], sizes = [8, 128], strides = [1, 1]} : vector<8x512xf32> to vector<8x128xf32>
    %122 = arith.negf %121 : vector<8x128xf32>
    %123 = math.exp %122 : vector<8x128xf32>
    %cst_36 = arith.constant 1.000000e+00 : f32
    %124 = vector.broadcast %cst_36 : f32 to vector<8x128xf32>
    %125 = arith.addf %124, %123 : vector<8x128xf32>
    %126 = arith.divf %124, %125 : vector<8x128xf32>
    %127 = vector.extract_strided_slice %114 {offsets = [0, 256], sizes = [8, 128], strides = [1, 1]} : vector<8x512xf32> to vector<8x128xf32>
    %128 = math.tanh %127 : vector<8x128xf32>
    %129 = vector.extract_strided_slice %114 {offsets = [0, 384], sizes = [8, 128], strides = [1, 1]} : vector<8x512xf32> to vector<8x128xf32>
    %130 = arith.negf %129 : vector<8x128xf32>
    %131 = math.exp %130 : vector<8x128xf32>
    %cst_37 = arith.constant 1.000000e+00 : f32
    %132 = vector.broadcast %cst_37 : f32 to vector<8x128xf32>
    %133 = arith.addf %132, %131 : vector<8x128xf32>
    %134 = arith.divf %132, %133 : vector<8x128xf32>
    %135 = arith.mulf %126, %103 : vector<8x128xf32>
    %136 = arith.mulf %120, %128 : vector<8x128xf32>
    %137 = arith.addf %135, %136 : vector<8x128xf32>
    %138 = math.tanh %137 : vector<8x128xf32>
    %139 = arith.mulf %134, %138 : vector<8x128xf32>
    %140 = arith.index_cast %c3_i32 : i32 to index
    %c0_38 = arith.constant 0 : index
    %c0_39 = arith.constant 0 : index
    %141 = vector.load %arg10[%140, %c0_38, %c0_39] : memref<4x8x128xf32, #tpu.memory_space<vmem>>, vector<1x8x128xf32>
    %142 = vector.shape_cast %141 : vector<1x8x128xf32> to vector<8x128xf32>
    %143 = vector.shape_cast %139 : vector<8x128xf32> to vector<1x8x128xf32>
    tpu.vector_store %arg10[%140, %c0_38, %c0_39], %143 {strides = array<i32>} : memref<4x8x128xf32, #tpu.memory_space<vmem>>, vector<1x8x128xf32>,
    %c4_i32 = arith.constant 4 : i32
    %c0_40 = arith.constant 0 : index
    %c0_41 = arith.constant 0 : index
    %c0_42 = arith.constant 0 : index
    %144 = vector.load %arg8[%c0_40, %c0_41, %c0_42] : memref<2x8x128xf32, #tpu.memory_space<vmem>>, vector<1x8x128xf32>
    %145 = vector.shape_cast %144 : vector<1x8x128xf32> to vector<8x128xf32>
    %146 = vector.shape_cast %139 : vector<8x128xf32> to vector<1x8x128xf32>
    tpu.vector_store %arg8[%c0_40, %c0_41, %c0_42], %146 {strides = array<i32>} : memref<2x8x128xf32, #tpu.memory_space<vmem>>, vector<1x8x128xf32>,
    %c0_43 = arith.constant 0 : index
    %c0_44 = arith.constant 0 : index
    %c0_45 = arith.constant 0 : index
    %147 = vector.load %arg9[%c0_43, %c0_44, %c0_45] : memref<2x8x128xf32, #tpu.memory_space<vmem>>, vector<1x8x128xf32>
    %148 = vector.shape_cast %147 : vector<1x8x128xf32> to vector<8x128xf32>
    %149 = vector.shape_cast %137 : vector<8x128xf32> to vector<1x8x128xf32>
    tpu.vector_store %arg9[%c0_43, %c0_44, %c0_45], %149 {strides = array<i32>} : memref<2x8x128xf32, #tpu.memory_space<vmem>>, vector<1x8x128xf32>,
    %c0_46 = arith.constant 0 : index
    %c0_47 = arith.constant 0 : index
    %c0_48 = arith.constant 0 : index
    %150 = vector.load %arg10[%c0_46, %c0_47, %c0_48] : memref<4x8x128xf32, #tpu.memory_space<vmem>>, vector<4x8x128xf32>
    %151 = vector.shape_cast %150 : vector<4x8x128xf32> to vector<32x128xf32>
    %c0_49 = arith.constant 0 : index
    %c0_50 = arith.constant 0 : index
    %152 = vector.load %arg4[%c0_49, %c0_50] : memref<128x512xf32, #tpu.memory_space<vmem>>, vector<128x512xf32>
    %cst_51 = arith.constant dense<0.000000e+00> : vector<32x512xf32>
    %153 = tpu.matmul %151, %152, %cst_51 {dimension_numbers = #tpu.dot_dimension_numbers<[1], [0], [0], [1], [0, 0, 1, 1], [], []>} : vector<32x128xf32>, vector<128x512xf32>, vector<32x512xf32> -> vector<32x512xf32>
    %c0_52 = arith.constant 0 : index
    %c0_53 = arith.constant 0 : index
    %154 = vector.load %arg6[%c0_52, %c0_53] : memref<1x512xf32, #tpu.memory_space<vmem>>, vector<1x512xf32>
    %155 = vector.broadcast %154 : vector<1x512xf32> to vector<32x512xf32>
    %156 = arith.addf %153, %155 : vector<32x512xf32>
    %157 = vector.shape_cast %156 : vector<32x512xf32> to vector<4x8x512xf32>
    %c0_54 = arith.constant 0 : index
    %c0_55 = arith.constant 0 : index
    %c0_56 = arith.constant 0 : index
    %158 = vector.load %arg11[%c0_54, %c0_55, %c0_56] : memref<4x8x512xf32, #tpu.memory_space<vmem>>, vector<4x8x512xf32>
    tpu.vector_store %arg11[%c0_54, %c0_55, %c0_56], %157 {strides = array<i32>} : memref<4x8x512xf32, #tpu.memory_space<vmem>>, vector<4x8x512xf32>,
    %c0_57 = arith.constant 0 : index
    %c0_58 = arith.constant 0 : index
    %159 = vector.load %arg5[%c0_57, %c0_58] : memref<128x512xf32, #tpu.memory_space<vmem>>, vector<128x512xf32>
    %c1 = arith.constant 1 : index
    %c0_59 = arith.constant 0 : index
    %c0_60 = arith.constant 0 : index
    %160 = vector.load %arg8[%c1, %c0_59, %c0_60] : memref<2x8x128xf32, #tpu.memory_space<vmem>>, vector<1x8x128xf32>
    %161 = vector.shape_cast %160 : vector<1x8x128xf32> to vector<8x128xf32>
    %c1_61 = arith.constant 1 : index
    %c0_62 = arith.constant 0 : index
    %c0_63 = arith.constant 0 : index
    %162 = vector.load %arg9[%c1_61, %c0_62, %c0_63] : memref<2x8x128xf32, #tpu.memory_space<vmem>>, vector<1x8x128xf32>
    %163 = vector.shape_cast %162 : vector<1x8x128xf32> to vector<8x128xf32>
    %c0_i32_64 = arith.constant 0 : i32
    %164 = arith.index_cast %c0_i32_64 : i32 to index
    %c0_65 = arith.constant 0 : index
    %c0_66 = arith.constant 0 : index
    %165 = vector.load %arg11[%164, %c0_65, %c0_66] : memref<4x8x512xf32, #tpu.memory_space<vmem>>, vector<1x8x512xf32>
    %166 = vector.shape_cast %165 : vector<1x8x512xf32> to vector<8x512xf32>
    %cst_67 = arith.constant dense<0.000000e+00> : vector<8x512xf32>
    %167 = tpu.matmul %161, %159, %cst_67 {dimension_numbers = #tpu.dot_dimension_numbers<[1], [0], [0], [1], [0, 0, 1, 1], [], []>} : vector<8x128xf32>, vector<128x512xf32>, vector<8x512xf32> -> vector<8x512xf32>
    %168 = arith.addf %166, %167 : vector<8x512xf32>
    %169 = vector.extract_strided_slice %168 {offsets = [0, 0], sizes = [8, 128], strides = [1, 1]} : vector<8x512xf32> to vector<8x128xf32>
    %170 = arith.negf %169 : vector<8x128xf32>
    %171 = math.exp %170 : vector<8x128xf32>
    %cst_68 = arith.constant 1.000000e+00 : f32
    %172 = vector.broadcast %cst_68 : f32 to vector<8x128xf32>
    %173 = arith.addf %172, %171 : vector<8x128xf32>
    %174 = arith.divf %172, %173 : vector<8x128xf32>
    %175 = vector.extract_strided_slice %168 {offsets = [0, 128], sizes = [8, 128], strides = [1, 1]} : vector<8x512xf32> to vector<8x128xf32>
    %176 = arith.negf %175 : vector<8x128xf32>
    %177 = math.exp %176 : vector<8x128xf32>
    %cst_69 = arith.constant 1.000000e+00 : f32
    %178 = vector.broadcast %cst_69 : f32 to vector<8x128xf32>
    %179 = arith.addf %178, %177 : vector<8x128xf32>
    %180 = arith.divf %178, %179 : vector<8x128xf32>
    %181 = vector.extract_strided_slice %168 {offsets = [0, 256], sizes = [8, 128], strides = [1, 1]} : vector<8x512xf32> to vector<8x128xf32>
    %182 = math.tanh %181 : vector<8x128xf32>
    %183 = vector.extract_strided_slice %168 {offsets = [0, 384], sizes = [8, 128], strides = [1, 1]} : vector<8x512xf32> to vector<8x128xf32>
    %184 = arith.negf %183 : vector<8x128xf32>
    %185 = math.exp %184 : vector<8x128xf32>
    %cst_70 = arith.constant 1.000000e+00 : f32
    %186 = vector.broadcast %cst_70 : f32 to vector<8x128xf32>
    %187 = arith.addf %186, %185 : vector<8x128xf32>
    %188 = arith.divf %186, %187 : vector<8x128xf32>
    %189 = arith.mulf %180, %163 : vector<8x128xf32>
    %190 = arith.mulf %174, %182 : vector<8x128xf32>
    %191 = arith.addf %189, %190 : vector<8x128xf32>
    %192 = math.tanh %191 : vector<8x128xf32>
    %193 = arith.mulf %188, %192 : vector<8x128xf32>
    %194 = arith.index_cast %c0_i32_64 : i32 to index
    %c0_71 = arith.constant 0 : index
    %c0_72 = arith.constant 0 : index
    %195 = vector.load %arg7[%194, %c0_71, %c0_72] : memref<4x8x128xf32, #tpu.memory_space<vmem>>, vector<1x8x128xf32>
    %196 = vector.shape_cast %195 : vector<1x8x128xf32> to vector<8x128xf32>
    %197 = vector.shape_cast %193 : vector<8x128xf32> to vector<1x8x128xf32>
    tpu.vector_store %arg7[%194, %c0_71, %c0_72], %197 {strides = array<i32>} : memref<4x8x128xf32, #tpu.memory_space<vmem>>, vector<1x8x128xf32>,
    %c1_i32_73 = arith.constant 1 : i32
    %198 = arith.index_cast %c1_i32_73 : i32 to index
    %c0_74 = arith.constant 0 : index
    %c0_75 = arith.constant 0 : index
    %199 = vector.load %arg11[%198, %c0_74, %c0_75] : memref<4x8x512xf32, #tpu.memory_space<vmem>>, vector<1x8x512xf32>
    %200 = vector.shape_cast %199 : vector<1x8x512xf32> to vector<8x512xf32>
    %cst_76 = arith.constant dense<0.000000e+00> : vector<8x512xf32>
    %201 = tpu.matmul %193, %159, %cst_76 {dimension_numbers = #tpu.dot_dimension_numbers<[1], [0], [0], [1], [0, 0, 1, 1], [], []>} : vector<8x128xf32>, vector<128x512xf32>, vector<8x512xf32> -> vector<8x512xf32>
    %202 = arith.addf %200, %201 : vector<8x512xf32>
    %203 = vector.extract_strided_slice %202 {offsets = [0, 0], sizes = [8, 128], strides = [1, 1]} : vector<8x512xf32> to vector<8x128xf32>
    %204 = arith.negf %203 : vector<8x128xf32>
    %205 = math.exp %204 : vector<8x128xf32>
    %cst_77 = arith.constant 1.000000e+00 : f32
    %206 = vector.broadcast %cst_77 : f32 to vector<8x128xf32>
    %207 = arith.addf %206, %205 : vector<8x128xf32>
    %208 = arith.divf %206, %207 : vector<8x128xf32>
    %209 = vector.extract_strided_slice %202 {offsets = [0, 128], sizes = [8, 128], strides = [1, 1]} : vector<8x512xf32> to vector<8x128xf32>
    %210 = arith.negf %209 : vector<8x128xf32>
    %211 = math.exp %210 : vector<8x128xf32>
    %cst_78 = arith.constant 1.000000e+00 : f32
    %212 = vector.broadcast %cst_78 : f32 to vector<8x128xf32>
    %213 = arith.addf %212, %211 : vector<8x128xf32>
    %214 = arith.divf %212, %213 : vector<8x128xf32>
    %215 = vector.extract_strided_slice %202 {offsets = [0, 256], sizes = [8, 128], strides = [1, 1]} : vector<8x512xf32> to vector<8x128xf32>
    %216 = math.tanh %215 : vector<8x128xf32>
    %217 = vector.extract_strided_slice %202 {offsets = [0, 384], sizes = [8, 128], strides = [1, 1]} : vector<8x512xf32> to vector<8x128xf32>
    %218 = arith.negf %217 : vector<8x128xf32>
    %219 = math.exp %218 : vector<8x128xf32>
    %cst_79 = arith.constant 1.000000e+00 : f32
    %220 = vector.broadcast %cst_79 : f32 to vector<8x128xf32>
    %221 = arith.addf %220, %219 : vector<8x128xf32>
    %222 = arith.divf %220, %221 : vector<8x128xf32>
    %223 = arith.mulf %214, %191 : vector<8x128xf32>
    %224 = arith.mulf %208, %216 : vector<8x128xf32>
    %225 = arith.addf %223, %224 : vector<8x128xf32>
    %226 = math.tanh %225 : vector<8x128xf32>
    %227 = arith.mulf %222, %226 : vector<8x128xf32>
    %228 = arith.index_cast %c1_i32_73 : i32 to index
    %c0_80 = arith.constant 0 : index
    %c0_81 = arith.constant 0 : index
    %229 = vector.load %arg7[%228, %c0_80, %c0_81] : memref<4x8x128xf32, #tpu.memory_space<vmem>>, vector<1x8x128xf32>
    %230 = vector.shape_cast %229 : vector<1x8x128xf32> to vector<8x128xf32>
    %231 = vector.shape_cast %227 : vector<8x128xf32> to vector<1x8x128xf32>
    tpu.vector_store %arg7[%228, %c0_80, %c0_81], %231 {strides = array<i32>} : memref<4x8x128xf32, #tpu.memory_space<vmem>>, vector<1x8x128xf32>,
    %c2_i32_82 = arith.constant 2 : i32
    %232 = arith.index_cast %c2_i32_82 : i32 to index
    %c0_83 = arith.constant 0 : index
    %c0_84 = arith.constant 0 : index
    %233 = vector.load %arg11[%232, %c0_83, %c0_84] : memref<4x8x512xf32, #tpu.memory_space<vmem>>, vector<1x8x512xf32>
    %234 = vector.shape_cast %233 : vector<1x8x512xf32> to vector<8x512xf32>
    %cst_85 = arith.constant dense<0.000000e+00> : vector<8x512xf32>
    %235 = tpu.matmul %227, %159, %cst_85 {dimension_numbers = #tpu.dot_dimension_numbers<[1], [0], [0], [1], [0, 0, 1, 1], [], []>} : vector<8x128xf32>, vector<128x512xf32>, vector<8x512xf32> -> vector<8x512xf32>
    %236 = arith.addf %234, %235 : vector<8x512xf32>
    %237 = vector.extract_strided_slice %236 {offsets = [0, 0], sizes = [8, 128], strides = [1, 1]} : vector<8x512xf32> to vector<8x128xf32>
    %238 = arith.negf %237 : vector<8x128xf32>
    %239 = math.exp %238 : vector<8x128xf32>
    %cst_86 = arith.constant 1.000000e+00 : f32
    %240 = vector.broadcast %cst_86 : f32 to vector<8x128xf32>
    %241 = arith.addf %240, %239 : vector<8x128xf32>
    %242 = arith.divf %240, %241 : vector<8x128xf32>
    %243 = vector.extract_strided_slice %236 {offsets = [0, 128], sizes = [8, 128], strides = [1, 1]} : vector<8x512xf32> to vector<8x128xf32>
    %244 = arith.negf %243 : vector<8x128xf32>
    %245 = math.exp %244 : vector<8x128xf32>
    %cst_87 = arith.constant 1.000000e+00 : f32
    %246 = vector.broadcast %cst_87 : f32 to vector<8x128xf32>
    %247 = arith.addf %246, %245 : vector<8x128xf32>
    %248 = arith.divf %246, %247 : vector<8x128xf32>
    %249 = vector.extract_strided_slice %236 {offsets = [0, 256], sizes = [8, 128], strides = [1, 1]} : vector<8x512xf32> to vector<8x128xf32>
    %250 = math.tanh %249 : vector<8x128xf32>
    %251 = vector.extract_strided_slice %236 {offsets = [0, 384], sizes = [8, 128], strides = [1, 1]} : vector<8x512xf32> to vector<8x128xf32>
    %252 = arith.negf %251 : vector<8x128xf32>
    %253 = math.exp %252 : vector<8x128xf32>
    %cst_88 = arith.constant 1.000000e+00 : f32
    %254 = vector.broadcast %cst_88 : f32 to vector<8x128xf32>
    %255 = arith.addf %254, %253 : vector<8x128xf32>
    %256 = arith.divf %254, %255 : vector<8x128xf32>
    %257 = arith.mulf %248, %225 : vector<8x128xf32>
    %258 = arith.mulf %242, %250 : vector<8x128xf32>
    %259 = arith.addf %257, %258 : vector<8x128xf32>
    %260 = math.tanh %259 : vector<8x128xf32>
    %261 = arith.mulf %256, %260 : vector<8x128xf32>
    %262 = arith.index_cast %c2_i32_82 : i32 to index
    %c0_89 = arith.constant 0 : index
    %c0_90 = arith.constant 0 : index
    %263 = vector.load %arg7[%262, %c0_89, %c0_90] : memref<4x8x128xf32, #tpu.memory_space<vmem>>, vector<1x8x128xf32>
    %264 = vector.shape_cast %263 : vector<1x8x128xf32> to vector<8x128xf32>
    %265 = vector.shape_cast %261 : vector<8x128xf32> to vector<1x8x128xf32>
    tpu.vector_store %arg7[%262, %c0_89, %c0_90], %265 {strides = array<i32>} : memref<4x8x128xf32, #tpu.memory_space<vmem>>, vector<1x8x128xf32>,
    %c3_i32_91 = arith.constant 3 : i32
    %266 = arith.index_cast %c3_i32_91 : i32 to index
    %c0_92 = arith.constant 0 : index
    %c0_93 = arith.constant 0 : index
    %267 = vector.load %arg11[%266, %c0_92, %c0_93] : memref<4x8x512xf32, #tpu.memory_space<vmem>>, vector<1x8x512xf32>
    %268 = vector.shape_cast %267 : vector<1x8x512xf32> to vector<8x512xf32>
    %cst_94 = arith.constant dense<0.000000e+00> : vector<8x512xf32>
    %269 = tpu.matmul %261, %159, %cst_94 {dimension_numbers = #tpu.dot_dimension_numbers<[1], [0], [0], [1], [0, 0, 1, 1], [], []>} : vector<8x128xf32>, vector<128x512xf32>, vector<8x512xf32> -> vector<8x512xf32>
    %270 = arith.addf %268, %269 : vector<8x512xf32>
    %271 = vector.extract_strided_slice %270 {offsets = [0, 0], sizes = [8, 128], strides = [1, 1]} : vector<8x512xf32> to vector<8x128xf32>
    %272 = arith.negf %271 : vector<8x128xf32>
    %273 = math.exp %272 : vector<8x128xf32>
    %cst_95 = arith.constant 1.000000e+00 : f32
    %274 = vector.broadcast %cst_95 : f32 to vector<8x128xf32>
    %275 = arith.addf %274, %273 : vector<8x128xf32>
    %276 = arith.divf %274, %275 : vector<8x128xf32>
    %277 = vector.extract_strided_slice %270 {offsets = [0, 128], sizes = [8, 128], strides = [1, 1]} : vector<8x512xf32> to vector<8x128xf32>
    %278 = arith.negf %277 : vector<8x128xf32>
    %279 = math.exp %278 : vector<8x128xf32>
    %cst_96 = arith.constant 1.000000e+00 : f32
    %280 = vector.broadcast %cst_96 : f32 to vector<8x128xf32>
    %281 = arith.addf %280, %279 : vector<8x128xf32>
    %282 = arith.divf %280, %281 : vector<8x128xf32>
    %283 = vector.extract_strided_slice %270 {offsets = [0, 256], sizes = [8, 128], strides = [1, 1]} : vector<8x512xf32> to vector<8x128xf32>
    %284 = math.tanh %283 : vector<8x128xf32>
    %285 = vector.extract_strided_slice %270 {offsets = [0, 384], sizes = [8, 128], strides = [1, 1]} : vector<8x512xf32> to vector<8x128xf32>
    %286 = arith.negf %285 : vector<8x128xf32>
    %287 = math.exp %286 : vector<8x128xf32>
    %cst_97 = arith.constant 1.000000e+00 : f32
    %288 = vector.broadcast %cst_97 : f32 to vector<8x128xf32>
    %289 = arith.addf %288, %287 : vector<8x128xf32>
    %290 = arith.divf %288, %289 : vector<8x128xf32>
    %291 = arith.mulf %282, %259 : vector<8x128xf32>
    %292 = arith.mulf %276, %284 : vector<8x128xf32>
    %293 = arith.addf %291, %292 : vector<8x128xf32>
    %294 = math.tanh %293 : vector<8x128xf32>
    %295 = arith.mulf %290, %294 : vector<8x128xf32>
    %296 = arith.index_cast %c3_i32_91 : i32 to index
    %c0_98 = arith.constant 0 : index
    %c0_99 = arith.constant 0 : index
    %297 = vector.load %arg7[%296, %c0_98, %c0_99] : memref<4x8x128xf32, #tpu.memory_space<vmem>>, vector<1x8x128xf32>
    %298 = vector.shape_cast %297 : vector<1x8x128xf32> to vector<8x128xf32>
    %299 = vector.shape_cast %295 : vector<8x128xf32> to vector<1x8x128xf32>
    tpu.vector_store %arg7[%296, %c0_98, %c0_99], %299 {strides = array<i32>} : memref<4x8x128xf32, #tpu.memory_space<vmem>>, vector<1x8x128xf32>,
    %c4_i32_100 = arith.constant 4 : i32
    %c1_101 = arith.constant 1 : index
    %c0_102 = arith.constant 0 : index
    %c0_103 = arith.constant 0 : index
    %300 = vector.load %arg8[%c1_101, %c0_102, %c0_103] : memref<2x8x128xf32, #tpu.memory_space<vmem>>, vector<1x8x128xf32>
    %301 = vector.shape_cast %300 : vector<1x8x128xf32> to vector<8x128xf32>
    %302 = vector.shape_cast %295 : vector<8x128xf32> to vector<1x8x128xf32>
    tpu.vector_store %arg8[%c1_101, %c0_102, %c0_103], %302 {strides = array<i32>} : memref<2x8x128xf32, #tpu.memory_space<vmem>>, vector<1x8x128xf32>,
    %c1_104 = arith.constant 1 : index
    %c0_105 = arith.constant 0 : index
    %c0_106 = arith.constant 0 : index
    %303 = vector.load %arg9[%c1_104, %c0_105, %c0_106] : memref<2x8x128xf32, #tpu.memory_space<vmem>>, vector<1x8x128xf32>
    %304 = vector.shape_cast %303 : vector<1x8x128xf32> to vector<8x128xf32>
    %305 = vector.shape_cast %293 : vector<8x128xf32> to vector<1x8x128xf32>
    tpu.vector_store %arg9[%c1_104, %c0_105, %c0_106], %305 {strides = array<i32>} : memref<2x8x128xf32, #tpu.memory_space<vmem>>, vector<1x8x128xf32>,
    return
  }
  func.func @transform_0(%arg0: i32, %arg1: i32) -> (i32, i32, i32) {
    %c0_i32 = arith.constant 0 : i32
    %c0_i32_0 = arith.constant 0 : i32
    return %arg1, %arg0, %c0_i32 : i32, i32, i32
  }
  func.func @transform_1(%arg0: i32, %arg1: i32) -> (i32, i32) {
    %c0_i32 = arith.constant 0 : i32
    %c0_i32_0 = arith.constant 0 : i32
    %c0_i32_1 = arith.constant 0 : i32
    return %c0_i32, %c0_i32_0 : i32, i32
  }
  func.func @transform_2(%arg0: i32, %arg1: i32) -> (i32, i32) {
    %c0_i32 = arith.constant 0 : i32
    %c0_i32_0 = arith.constant 0 : i32
    %c0_i32_1 = arith.constant 0 : i32
    return %c0_i32, %c0_i32_0 : i32, i32
  }
  func.func @transform_3(%arg0: i32, %arg1: i32) -> (i32, i32) {
    %c0_i32 = arith.constant 0 : i32
    %c0_i32_0 = arith.constant 0 : i32
    %c0_i32_1 = arith.constant 0 : i32
    return %c0_i32, %c0_i32_0 : i32, i32
  }
  func.func @transform_4(%arg0: i32, %arg1: i32) -> (i32, i32) {
    %c0_i32 = arith.constant 0 : i32
    %c0_i32_0 = arith.constant 0 : i32
    %c0_i32_1 = arith.constant 0 : i32
    return %c0_i32, %c0_i32_0 : i32, i32
  }
  func.func @transform_5(%arg0: i32, %arg1: i32) -> (i32, i32, i32) {
    %c0_i32 = arith.constant 0 : i32
    %c0_i32_0 = arith.constant 0 : i32
    return %arg1, %arg0, %c0_i32 : i32, i32, i32
  }
}

</mosaic_0001>

<llo_original>
// kernel: tpu_custom_call.1
$region0: #{tpu_custom_call.1}
  #allocation0 [shape = 'u32[]', space=smem, size = 0x4, offset = 0x4, fixed_abs, tag = 'smem constant byte address 0x4 - core index']
  #allocation1 [shape = 'u32[144,128]{1,0:T(1,128)}', space=vmem, size = 0x12000, scoped, tag = 'internal scratch']
  #allocation2 [shape = 'f32[2,8,128]{2,1,0:T(8,128)}', space=vmem, size = 0x2000, scoped, tag = 'scratch operand']
  #allocation3 [shape = 'f32[2,8,128]{2,1,0:T(8,128)}', space=vmem, size = 0x2000, scoped, tag = 'scratch operand']
  #allocation4 [shape = 'f32[4,8,128]{2,1,0:T(8,128)}', space=vmem, size = 0x4000, scoped, tag = 'scratch operand']
  #allocation5 [shape = 'f32[4,8,512]{2,1,0:T(8,128)}', space=vmem, size = 0x10000, scoped, tag = 'scratch operand']
  %s0 = inlined_call_operand.hbm [shape: f32[8,8,512], index: 0, kind: input, shape index: {}]
  %s1 = inlined_call_operand.hbm [shape: f32[128,512], index: 1, kind: input, shape index: {}]
  %s2 = inlined_call_operand.hbm [shape: f32[128,512], index: 2, kind: input, shape index: {}]
  %s3 = inlined_call_operand.hbm [shape: f32[128,512], index: 3, kind: input, shape index: {}]
  %s4 = inlined_call_operand.vmem [shape: f32[1,512], index: 4, kind: input, shape index: {}]
  %s5 = inlined_call_operand.hbm [shape: f32[8,8,128], index: 5, kind: output, shape index: {}]
  %s6 = sld [smem:[#allocation0]]
  $region73: #{tpu_custom_call.1} parent=0
    _
  %s8 = ssub.s32 1, %s6
  %s9 = scalar_select 0, %s8, %s6
  $region1: #{tpu_custom_call.1} parent=0
    #allocation6 [shape = 'u8[131072]{0}', space=vmem, size = 0x20000, scoped, tag = 'input window, operand 0']
    #allocation7 [shape = 's32[2]{0}', space=sflag, size = 0x8, scoped, tag = 'scoped memory for tpu_custom_call.1']
    #allocation8 [shape = 's32[2]{0}', space=sflag, size = 0x8, scoped, tag = 'scoped memory for tpu_custom_call.1']
    #allocation9 [shape = 'u8[262144]{0}', space=vmem, size = 0x40000, scoped, tag = 'input window, operand 1, single buffered']
    #allocation10 [shape = 's32[1]{0}', space=sflag, size = 0x4, scoped, tag = 'scoped memory for tpu_custom_call.1']
    #allocation11 [shape = 'u8[262144]{0}', space=vmem, size = 0x40000, scoped, tag = 'input window, operand 2, single buffered']
    #allocation12 [shape = 'u8[262144]{0}', space=vmem, size = 0x40000, scoped, tag = 'input window, operand 3, single buffered']
    #allocation13 [shape = 's32[1]{0}', space=sflag, size = 0x4, scoped, tag = 'scoped memory for tpu_custom_call.1']
    #allocation14 [shape = 'u8[32768]{0}', space=vmem, size = 0x8000, scoped, tag = 'output window, operand 0']
    %10 = vsyncpa [#allocation7], 0
    %s11 = scalar_lea.sflag [#allocation7], 1
    %12 = vsyncpa %s11, 0
    %13 = vsyncpa [#allocation10], 0
    %14 = vsyncpa [#allocation13], 0
    %15 = vsyncpa [#allocation8], 0
    %s16 = scalar_lea.sflag [#allocation8], 1
    %17 = vsyncpa %s16, 0
    loop: start=0, step=1, limit=4
    $region2: #{tpu_custom_call.1} parent=1 // loop_pre_header
      _
    $region3: #{tpu_custom_call.1} parent=1 // loop_header
      %s19 = sphi 0, %s23
      %p20 = scmp.ge.s32.totalorder %s19, 4
      %s26 = sphi 0, %s38
      %s27 = sphi 0, %s34
      %s28 = sphi 0, %s26
      %s29 = sphi 0, %s27
      %s30 = sphi 0, %s28
      %s31 = sphi 0, %s29
      %s43 = sphi 0, %s45
      %s46 = sphi 0, %s43
      %s47 = sphi 0, %s46
      %s63 = sphi 0, %s47
      %s67 = sphi 0, %s67
      %s69 = sphi 0, %s67
      %s70 = sphi 0, %s69
      %s84 = sphi 0, %s70
      %s88 = sphi 0, %s88
      %s90 = sphi 0, %s88
      %s91 = sphi 0, %s90
      %s105 = sphi 0, %s91
      %s109 = sphi 0, %s109
      %s111 = sphi 0, %s109
      %s112 = sphi 0, %s111
      %s126 = sphi 0, %s112
      %s130 = sphi 0, %s130
      %s132 = sphi 0, %s130
      %s133 = sphi 0, %s132
      %s147 = sphi 0, %s133
      %s155 = sphi 0, %s157
      %s158 = sphi 0, %s155
      %s159 = sphi 0, %s158
      %s175 = sphi 0, %s159
    $region4: #{tpu_custom_call.1} parent=1 // loop_header_branch
      %22 = sbr.rel (%p20) target = $region8
    $region5: #{tpu_custom_call.1} parent=1 // loop_body
      %s24 = ssub.s32 %s19, 1
      %s25 = ssub.s32 %s19, 2
      %s32 = sadd.s32 1, %s27
      %p33 = scmp.ge.s32.totalorder %s32, 2
      %s34 = scalar_select %p33, 0, %s32
      %s35 = sadd.s32 1, %s26
      %s36 = scalar_select %p33, %s35, %s26
      %p37 = scmp.ge.s32.totalorder %s36, 1
      %s38 = scalar_select %p37, 0, %s36
      %s39 = ssub.s32 %s27, %s34
      %s40 = ssub.s32 %s26, %s38
      %s41 = sor.u32 %s39, %s40
      %p42 = scmp.eq.s32.totalorder %s41, 0
      %s44 = sadd.s32 %s43, 1
      %s45 = scalar_select %p42, %s43, %s44
      %p48 = pneg %p42
      %p49 = scmp.eq.s32.totalorder %s19, 1
      %p50 = por %p48, %p49
      %p51 = scmp.ne.s32.totalorder %s43, %s46
      %p52 = scmp.eq.s32.totalorder %s19, 0
      %p53 = por %p51, %p52
      %p54 = scmp.ne.s32.totalorder %s43, %s46
      %p55 = scmp.eq.s32.totalorder %s24, 1
      %p56 = por %p54, %p55
      %p57 = scmp.ne.s32.totalorder %s46, %s47
      %p58 = scmp.eq.s32.totalorder %s24, 0
      %p59 = por %p57, %p58
      %p60 = scmp.ne.s32.totalorder %s46, %s47
      %p61 = scmp.eq.s32.totalorder %s25, 1
      %p62 = por %p60, %p61
      %p64 = scmp.ne.s32.totalorder %s47, %s63
      %p65 = scmp.eq.s32.totalorder %s25, 0
      %p66 = por %p64, %p65
      %s68 = sadd.s32 %s67, 1
      %p71 = scmp.eq.s32.totalorder %s19, 1
      %p72 = scmp.ne.s32.totalorder %s67, %s69
      %p73 = scmp.eq.s32.totalorder %s19, 0
      %p74 = por %p72, %p73
      %p75 = scmp.ne.s32.totalorder %s67, %s69
      %p76 = scmp.eq.s32.totalorder %s24, 1
      %p77 = por %p75, %p76
      %p78 = scmp.ne.s32.totalorder %s69, %s70
      %p79 = scmp.eq.s32.totalorder %s24, 0
      %p80 = por %p78, %p79
      %p81 = scmp.ne.s32.totalorder %s69, %s70
      %p82 = scmp.eq.s32.totalorder %s25, 1
      %p83 = por %p81, %p82
      %p85 = scmp.ne.s32.totalorder %s70, %s84
      %p86 = scmp.eq.s32.totalorder %s25, 0
      %p87 = por %p85, %p86
      %s89 = sadd.s32 %s88, 1
      %p92 = scmp.eq.s32.totalorder %s19, 1
      %p93 = scmp.ne.s32.totalorder %s88, %s90
      %p94 = scmp.eq.s32.totalorder %s19, 0
      %p95 = por %p93, %p94
      %p96 = scmp.ne.s32.totalorder %s88, %s90
      %p97 = scmp.eq.s32.totalorder %s24, 1
      %p98 = por %p96, %p97
      %p99 = scmp.ne.s32.totalorder %s90, %s91
      %p100 = scmp.eq.s32.totalorder %s24, 0
      %p101 = por %p99, %p100
      %p102 = scmp.ne.s32.totalorder %s90, %s91
      %p103 = scmp.eq.s32.totalorder %s25, 1
      %p104 = por %p102, %p103
      %p106 = scmp.ne.s32.totalorder %s91, %s105
      %p107 = scmp.eq.s32.totalorder %s25, 0
      %p108 = por %p106, %p107
      %s110 = sadd.s32 %s109, 1
      %p113 = scmp.eq.s32.totalorder %s19, 1
      %p114 = scmp.ne.s32.totalorder %s109, %s111
      %p115 = scmp.eq.s32.totalorder %s19, 0
      %p116 = por %p114, %p115
      %p117 = scmp.ne.s32.totalorder %s109, %s111
      %p118 = scmp.eq.s32.totalorder %s24, 1
      %p119 = por %p117, %p118
      %p120 = scmp.ne.s32.totalorder %s111, %s112
      %p121 = scmp.eq.s32.totalorder %s24, 0
      %p122 = por %p120, %p121
      %p123 = scmp.ne.s32.totalorder %s111, %s112
      %p124 = scmp.eq.s32.totalorder %s25, 1
      %p125 = por %p123, %p124
      %p127 = scmp.ne.s32.totalorder %s112, %s126
      %p128 = scmp.eq.s32.totalorder %s25, 0
      %p129 = por %p127, %p128
      %s131 = sadd.s32 %s130, 1
      %p134 = scmp.eq.s32.totalorder %s19, 1
      %p135 = scmp.ne.s32.totalorder %s130, %s132
      %p136 = scmp.eq.s32.totalorder %s19, 0
      %p137 = por %p135, %p136
      %p138 = scmp.ne.s32.totalorder %s130, %s132
      %p139 = scmp.eq.s32.totalorder %s24, 1
      %p140 = por %p138, %p139
      %p141 = scmp.ne.s32.totalorder %s132, %s133
      %p142 = scmp.eq.s32.totalorder %s24, 0
      %p143 = por %p141, %p142
      %p144 = scmp.ne.s32.totalorder %s132, %s133
      %p145 = scmp.eq.s32.totalorder %s25, 1
      %p146 = por %p144, %p145
      %p148 = scmp.ne.s32.totalorder %s133, %s147
      %p149 = scmp.eq.s32.totalorder %s25, 0
      %p150 = por %p148, %p149
      %s151 = ssub.s32 %s27, %s34
      %s152 = ssub.s32 %s26, %s38
      %s153 = sor.u32 %s151, %s152
      %p154 = scmp.eq.s32.totalorder %s153, 0
      %s156 = sadd.s32 %s155, 1
      %s157 = scalar_select %p154, %s155, %s156
      %p160 = pneg %p154
      %p161 = scmp.eq.s32.totalorder %s19, 1
      %p162 = por %p160, %p161
      %p163 = scmp.ne.s32.totalorder %s155, %s158
      %p164 = scmp.eq.s32.totalorder %s19, 0
      %p165 = por %p163, %p164
      %p166 = scmp.ne.s32.totalorder %s155, %s158
      %p167 = scmp.eq.s32.totalorder %s24, 1
      %p168 = por %p166, %p167
      %p169 = scmp.ne.s32.totalorder %s158, %s159
      %p170 = scmp.eq.s32.totalorder %s24, 0
      %p171 = por %p169, %p170
      %p172 = scmp.ne.s32.totalorder %s158, %s159
      %p173 = scmp.eq.s32.totalorder %s25, 1
      %p174 = por %p172, %p173
      %p176 = scmp.ne.s32.totalorder %s159, %s175
      %p177 = scmp.eq.s32.totalorder %s25, 0
      %p178 = por %p176, %p177
      %p179 = scmp.le.s32.totalorder 1, %s19
      %p180 = scmp.lt.s32.totalorder %s19, 3
      %p181 = pnand %p179, %p180
      %p182 = pneg %p181
      // Predicated region
      $region9: #{tpu_custom_call.1} parent=5 // pred_check
        _
      $region10: #{tpu_custom_call.1} parent=5 // pred_check_branch
        %184 = sbr.rel (%p181) target = $region12
      $region11: #{tpu_custom_call.1} parent=5 // pred_region
        %s185 = ssub.s32 %s19, 1
        // Predicated region
        $region13: #{tpu_custom_call.1} parent=11 // pred_check
          %p186 = pneg %p80
        $region14: #{tpu_custom_call.1} parent=11 // pred_check_branch
          %188 = sbr.rel (%p186) target = $region16
        $region15: #{tpu_custom_call.1} parent=11 // pred_region
          %s190 = ssub.s32 8192, 8192
          %191 = vsyncadd [#allocation10], %s190
          %s192 = sshll.u32 [#allocation9], 4
          %s193 = int_to_ptr.vmem [resolvable:$true] %s192
          %198 = dma.hbm_to_vmem [thread:$0]  %s1, 8192, %s193, [#allocation10], 512, 512, 32
        $region16: #{tpu_custom_call.1} parent=11 // pred_fallthru
          _
        // Predicated region
        $region17: #{tpu_custom_call.1} parent=11 // pred_check
          %p199 = pneg %p101
        $region18: #{tpu_custom_call.1} parent=11 // pred_check_branch
          %201 = sbr.rel (%p199) target = $region20
        $region19: #{tpu_custom_call.1} parent=11 // pred_region
          %s203 = ssub.s32 8192, 8192
          %204 = vsyncadd [#allocation10], %s203
          %s205 = sshll.u32 [#allocation11], 4
          %s206 = int_to_ptr.vmem [resolvable:$true] %s205
          %211 = dma.hbm_to_vmem [thread:$0]  %s2, 8192, %s206, [#allocation10], 512, 512, 32
        $region20: #{tpu_custom_call.1} parent=11 // pred_fallthru
          _
        // Predicated region
        $region21: #{tpu_custom_call.1} parent=11 // pred_check
          %p212 = pneg %p122
        $region22: #{tpu_custom_call.1} parent=11 // pred_check_branch
          %214 = sbr.rel (%p212) target = $region24
        $region23: #{tpu_custom_call.1} parent=11 // pred_region
          %s216 = ssub.s32 8192, 8192
          %217 = vsyncadd [#allocation13], %s216
          %s218 = sshll.u32 [#allocation12], 4
          %s219 = int_to_ptr.vmem [resolvable:$true] %s218
          %224 = dma.hbm_to_vmem [thread:$0]  %s3, 8192, %s219, [#allocation13], 512, 512, 32
        $region24: #{tpu_custom_call.1} parent=11 // pred_fallthru
          _
        // Predicated region
        $region25: #{tpu_custom_call.1} parent=11 // pred_check
          %p225 = pneg %p143
        $region26: #{tpu_custom_call.1} parent=11 // pred_check_branch
          %227 = sbr.rel (%p225) target = $region28
        $region27: #{tpu_custom_call.1} parent=11 // pred_region
          _
        $region28: #{tpu_custom_call.1} parent=11 // pred_fallthru
          _
      $region12: #{tpu_custom_call.1} parent=5 // pred_fallthru
        _
      %p228 = scmp.lt.s32.totalorder %s19, 2
      // Predicated region
      $region29: #{tpu_custom_call.1} parent=5 // pred_check
        %p229 = pneg %p228
      $region30: #{tpu_custom_call.1} parent=5 // pred_check_branch
        %231 = sbr.rel (%p229) target = $region32
      $region31: #{tpu_custom_call.1} parent=5 // pred_region
        // Predicated region
        $region33: #{tpu_custom_call.1} parent=31 // pred_check
          %p232 = pneg %p53
        $region34: #{tpu_custom_call.1} parent=31 // pred_check_branch
          %234 = sbr.rel (%p232) target = $region36
        $region35: #{tpu_custom_call.1} parent=31 // pred_region
          %s235 = sand.u32 %s43, 1
          %s236 = scalar_lea.sflag [#allocation7], %s235
          %s237 = sand.u32 %s43, 1
          %s238 = smul.addr %s237, 128
          %s239 = scalar_lea.vmem [#allocation6], %s238
          %s240 = smul.u32 4, %s27
          %s242 = ssub.s32 2048, 2048
          %243 = vsyncadd %s236, %s242
          %s244 = smul.addr %s26, 4
          %s245 = smul.addr %s240, 4
          %s246 = sadd.s32 %s244, %s245
          %s247 = smul.addr %s246, 128
          %s248 = scalar_lea.hbm %s0, %s247
          %s249 = sshll.u32 %s239, 4
          %s250 = int_to_ptr.vmem [resolvable:$true] %s249
          %255 = dma.hbm_to_vmem [thread:$0]  %s248, 2048, %s250, %s236, 512, 512, 32
        $region36: #{tpu_custom_call.1} parent=31 // pred_fallthru
          _
      $region32: #{tpu_custom_call.1} parent=5 // pred_fallthru
        _
      %p256 = scmp.le.s32.totalorder 1, %s19
      %p257 = scmp.lt.s32.totalorder %s19, 3
      %p258 = pnand %p256, %p257
      %p259 = pneg %p258
      // Predicated region
      $region37: #{tpu_custom_call.1} parent=5 // pred_check
        _
      $region38: #{tpu_custom_call.1} parent=5 // pred_check_branch
        %261 = sbr.rel (%p258) target = $region40
      $region39: #{tpu_custom_call.1} parent=5 // pred_region
        %s262 = ssub.s32 %s19, 1
        %s263 = sand.u32 %s46, 1
        %s264 = scalar_lea.sflag [#allocation7], %s263
        %s265 = sand.u32 %s46, 1
        %s266 = smul.addr %s265, 128
        %s267 = scalar_lea.vmem [#allocation6], %s266
        // Predicated region
        $region41: #{tpu_custom_call.1} parent=39 // pred_check
          %p268 = pneg %p59
        $region42: #{tpu_custom_call.1} parent=39 // pred_check_branch
          %270 = sbr.rel (%p268) target = $region44
        $region43: #{tpu_custom_call.1} parent=39 // pred_region
          %271 = dma.done %s264, 2048
        $region44: #{tpu_custom_call.1} parent=39 // pred_fallthru
          _
        // Predicated region
        $region45: #{tpu_custom_call.1} parent=39 // pred_check
          %p272 = pneg %p80
        $region46: #{tpu_custom_call.1} parent=39 // pred_check_branch
          %274 = sbr.rel (%p272) target = $region48
        $region47: #{tpu_custom_call.1} parent=39 // pred_region
          %275 = dma.done [#allocation10], 8192
        $region48: #{tpu_custom_call.1} parent=39 // pred_fallthru
          _
        // Predicated region
        $region49: #{tpu_custom_call.1} parent=39 // pred_check
          %p276 = pneg %p101
        $region50: #{tpu_custom_call.1} parent=39 // pred_check_branch
          %278 = sbr.rel (%p276) target = $region52
        $region51: #{tpu_custom_call.1} parent=39 // pred_region
          %279 = dma.done [#allocation10], 8192
        $region52: #{tpu_custom_call.1} parent=39 // pred_fallthru
          _
        // Predicated region
        $region53: #{tpu_custom_call.1} parent=39 // pred_check
          %p280 = pneg %p122
        $region54: #{tpu_custom_call.1} parent=39 // pred_check_branch
          %282 = sbr.rel (%p280) target = $region56
        $region55: #{tpu_custom_call.1} parent=39 // pred_region
          %283 = dma.done [#allocation13], 8192
        $region56: #{tpu_custom_call.1} parent=39 // pred_fallthru
          _
        %s284 = sand.u32 %s46, 1
        %s285 = scalar_lea.sflag [#allocation7], %s284
        %s286 = sand.u32 %s46, 1
        %s287 = smul.addr %s286, 128
        %s288 = scalar_lea.vmem [#allocation6], %s287
        %p289 = pneg %p59
        %p290 = pneg %p56
        %p291 = pneg %p80
        %p292 = pneg %p77
        %p293 = pneg %p101
        %p294 = pneg %p98
        %p295 = pneg %p122
        %p296 = pneg %p119
        %p297 = pneg %p143
        %p298 = pneg %p140
        %p299 = pneg %p171
        %p300 = pneg %p168
        %s301 = sand.u32 %s158, 1
        %s302 = scalar_lea.sflag [#allocation8], %s301
        %s303 = sand.u32 %s158, 1
        %s304 = smul.addr %s303, 32
        %s305 = scalar_lea.vmem [#allocation14], %s304
        %s306 = smul.u32 4, %s29
        %s307 = smul.u32 4, %s29
        %p308 = scmp.eq.s32.totalorder %s29, 0
        // Predicated region
        $region57: #{tpu_custom_call.1} parent=39 // pred_check
          %p309 = pneg %p308
        $region58: #{tpu_custom_call.1} parent=39 // pred_check_branch
          %311 = sbr.rel (%p309) target = $region60
        $region59: #{tpu_custom_call.1} parent=39 // pred_region
          %312 = vst [vmem:[#allocation2] sm:$0xff] 0.0
          %313 = vst [vmem:[#allocation2 + $0x8] sm:$0xff] 0.0
          %314 = vst [vmem:[#allocation3] sm:$0xff] 0.0
          %315 = vst [vmem:[#allocation3 + $0x8] sm:$0xff] 0.0
        $region60: #{tpu_custom_call.1} parent=39 // pred_fallthru
          _
        %v316 = vld [vmem:[#allocation9] sm:$0xff]
        %v317 = vld [vmem:[#allocation9 + $0x8] sm:$0xff]
        %v318 = vld [vmem:[#allocation9 + $0x10] sm:$0xff]
        %v319 = vld [vmem:[#allocation9 + $0x18] sm:$0xff]
        %v320 = vld [vmem:[#allocation9 + $0x20] sm:$0xff]
        %v321 = vld [vmem:[#allocation9 + $0x28] sm:$0xff]
        %v322 = vld [vmem:[#allocation9 + $0x30] sm:$0xff]
        %v323 = vld [vmem:[#allocation9 + $0x38] sm:$0xff]
        %v324 = vld [vmem:[#allocation9 + $0x40] sm:$0xff]
        %v325 = vld [vmem:[#allocation9 + $0x48] sm:$0xff]
        %v326 = vld [vmem:[#allocation9 + $0x50] sm:$0xff]
        %v327 = vld [vmem:[#allocation9 + $0x58] sm:$0xff]
        %v328 = vld [vmem:[#allocation9 + $0x60] sm:$0xff]
        %v329 = vld [vmem:[#allocation9 + $0x68] sm:$0xff]
        %v330 = vld [vmem:[#allocation9 + $0x70] sm:$0xff]
        %v331 = vld [vmem:[#allocation9 + $0x78] sm:$0xff]
        %v332 = vld [vmem:[#allocation9 + $0x80] sm:$0xff]
        %v333 = vld [vmem:[#allocation9 + $0x88] sm:$0xff]
        %v334 = vld [vmem:[#allocation9 + $0x90] sm:$0xff]
        %v335 = vld [vmem:[#allocation9 + $0x98] sm:$0xff]
        %v336 = vld [vmem:[#allocation9 + $0xa0] sm:$0xff]
        %v337 = vld [vmem:[#allocation9 + $0xa8] sm:$0xff]
        %v338 = vld [vmem:[#allocation9 + $0xb0] sm:$0xff]
        %v339 = vld [vmem:[#allocation9 + $0xb8] sm:$0xff]
        %v340 = vld [vmem:[#allocation9 + $0xc0] sm:$0xff]
        %v341 = vld [vmem:[#allocation9 + $0xc8] sm:$0xff]
        %v342 = vld [vmem:[#allocation9 + $0xd0] sm:$0xff]
        %v343 = vld [vmem:[#allocation9 + $0xd8] sm:$0xff]
        %v344 = vld [vmem:[#allocation9 + $0xe0] sm:$0xff]
        %v345 = vld [vmem:[#allocation9 + $0xe8] sm:$0xff]
        %v346 = vld [vmem:[#allocation9 + $0xf0] sm:$0xff]
        %v347 = vld [vmem:[#allocation9 + $0xf8] sm:$0xff]
        %v348 = vld [vmem:[#allocation9 + $0x100] sm:$0xff]
        %v349 = vld [vmem:[#allocation9 + $0x108] sm:$0xff]
        %v350 = vld [vmem:[#allocation9 + $0x110] sm:$0xff]
        %v351 = vld [vmem:[#allocation9 + $0x118] sm:$0xff]
        %v352 = vld [vmem:[#allocation9 + $0x120] sm:$0xff]
        %v353 = vld [vmem:[#allocation9 + $0x128] sm:$0xff]
        %v354 = vld [vmem:[#allocation9 + $0x130] sm:$0xff]
        %v355 = vld [vmem:[#allocation9 + $0x138] sm:$0xff]
        %v356 = vld [vmem:[#allocation9 + $0x140] sm:$0xff]
        %v357 = vld [vmem:[#allocation9 + $0x148] sm:$0xff]
        %v358 = vld [vmem:[#allocation9 + $0x150] sm:$0xff]
        %v359 = vld [vmem:[#allocation9 + $0x158] sm:$0xff]
        %v360 = vld [vmem:[#allocation9 + $0x160] sm:$0xff]
        %v361 = vld [vmem:[#allocation9 + $0x168] sm:$0xff]
        %v362 = vld [vmem:[#allocation9 + $0x170] sm:$0xff]
        %v363 = vld [vmem:[#allocation9 + $0x178] sm:$0xff]
        %v364 = vld [vmem:[#allocation9 + $0x180] sm:$0xff]
        %v365 = vld [vmem:[#allocation9 + $0x188] sm:$0xff]
        %v366 = vld [vmem:[#allocation9 + $0x190] sm:$0xff]
        %v367 = vld [vmem:[#allocation9 + $0x198] sm:$0xff]
        %v368 = vld [vmem:[#allocation9 + $0x1a0] sm:$0xff]
        %v369 = vld [vmem:[#allocation9 + $0x1a8] sm:$0xff]
        %v370 = vld [vmem:[#allocation9 + $0x1b0] sm:$0xff]
        %v371 = vld [vmem:[#allocation9 + $0x1b8] sm:$0xff]
        %v372 = vld [vmem:[#allocation9 + $0x1c0] sm:$0xff]
        %v373 = vld [vmem:[#allocation9 + $0x1c8] sm:$0xff]
        %v374 = vld [vmem:[#allocation9 + $0x1d0] sm:$0xff]
        %v375 = vld [vmem:[#allocation9 + $0x1d8] sm:$0xff]
        %v376 = vld [vmem:[#allocation9 + $0x1e0] sm:$0xff]
        %v377 = vld [vmem:[#allocation9 + $0x1e8] sm:$0xff]
        %v378 = vld [vmem:[#allocation9 + $0x1f0] sm:$0xff]
        %v379 = vld [vmem:[#allocation9 + $0x1f8] sm:$0xff]
        %v380 = vld [vmem:[#allocation2] sm:$0xff]
        %v381 = vld [vmem:[#allocation3] sm:$0xff]
        %v382 = vld [vmem:[%s267] sm:$0xff]
        %v383 = vld [vmem:[%s267 + $0x8] sm:$0xff]
        %v384 = vld [vmem:[%s267 + $0x10] sm:$0xff]
        %v385 = vld [vmem:[%s267 + $0x18] sm:$0xff]
        %386 = vmatprep.subr.mxu0 %v317
        %387 = vmatpush1.msra.mxu0 %v316
        %388 = vmatprep.subr.mxu0 %v321
        %389 = vmatpush1.msra.mxu0 %v320
        %390 = vmatprep.subr.mxu0 %v325
        %391 = vmatpush1.msra.mxu0 %v324
        %392 = vmatprep.subr.mxu0 %v329
        %393 = vmatpush1.msra.mxu0 %v328
        %394 = vmatprep.subr.mxu0 %v333
        %395 = vmatpush1.msra.mxu0 %v332
        %396 = vmatprep.subr.mxu0 %v337
        %397 = vmatpush1.msra.mxu0 %v336
        %398 = vmatprep.subr.mxu0 %v341
        %399 = vmatpush1.msra.mxu0 %v340
        %400 = vmatprep.subr.mxu0 %v345
        %401 = vmatpush1.msra.mxu0 %v344
        %402 = vmatprep.subr.mxu0 %v349
        %403 = vmatpush1.msra.mxu0 %v348
        %404 = vmatprep.subr.mxu0 %v353
        %405 = vmatpush1.msra.mxu0 %v352
        %406 = vmatprep.subr.mxu0 %v357
        %407 = vmatpush1.msra.mxu0 %v356
        %408 = vmatprep.subr.mxu0 %v361
        %409 = vmatpush1.msra.mxu0 %v360
        %410 = vmatprep.subr.mxu0 %v365
        %411 = vmatpush1.msra.mxu0 %v364
        %412 = vmatprep.subr.mxu0 %v369
        %413 = vmatpush1.msra.mxu0 %v368
        %414 = vmatprep.subr.mxu0 %v373
        %415 = vmatpush1.msra.mxu0 %v372
        %416 = vmatprep.subr.mxu0 %v377
        %417 = vmatpush1.msra.mxu0 %v376
        %418 = vmatprep.subr.mxu0 0.0
        %419 = vmatpush1.msra.mxu0 0.0
        %420 = vmatprep.subr.mxu0 0.0
        %421 = vmatpush1.msra.mxu0 0.0
        %422 = vmatprep.subr.mxu0 0.0
        %423 = vmatpush1.msra.mxu0 0.0
        %424 = vmatprep.subr.mxu0 0.0
        %425 = vmatpush1.msra.mxu0 0.0
        %426 = vmatprep.subr.mxu0 0.0
        %427 = vmatpush1.msra.mxu0 0.0
        %428 = vmatprep.subr.mxu0 0.0
        %429 = vmatpush1.msra.mxu0 0.0
        %430 = vmatprep.subr.mxu0 0.0
        %431 = vmatpush1.msra.mxu0 0.0
        %432 = vmatprep.subr.mxu0 0.0
        %433 = vmatpush1.msra.mxu0 0.0
        %434 = vmatprep.subr.mxu0 0.0
        %435 = vmatpush1.msra.mxu0 0.0
        %436 = vmatprep.subr.mxu0 0.0
        %437 = vmatpush1.msra.mxu0 0.0
        %438 = vmatprep.subr.mxu0 0.0
        %439 = vmatpush1.msra.mxu0 0.0
        %440 = vmatprep.subr.mxu0 0.0
        %441 = vmatpush1.msra.mxu0 0.0
        %442 = vmatprep.subr.mxu0 0.0
        %443 = vmatpush1.msra.mxu0 0.0
        %444 = vmatprep.subr.mxu0 0.0
        %445 = vmatpush1.msra.mxu0 0.0
        %446 = vmatprep.subr.mxu0 0.0
        %447 = vmatpush1.msra.mxu0 0.0
        %448 = vmatprep.subr.mxu0 0.0
        %449 = vmatpush1.msra.mxu0 0.0
        %450 = vmatprep.mubr.f32.mxu0 0.0
        %451 = vmatmul.mubr.f32.gmra.mrb[0].mxu0 %v380
        %v452 = vpop.f32.mrb[0].mxu0
        %v453 = vadd.f32 0.0, %v452
        %v454 = vpop.f32.mrb[0].mxu0
        %v455 = vadd.f32 0.0, %v454
        %456 = vdwg.mxu0
        %457 = vmatprep.subr.mxu0 %v319
        %458 = vmatpush1.msra.mxu0 %v318
        %459 = vmatprep.subr.mxu0 %v323
        %460 = vmatpush1.msra.mxu0 %v322
        %461 = vmatprep.subr.mxu0 %v327
        %462 = vmatpush1.msra.mxu0 %v326
        %463 = vmatprep.subr.mxu0 %v331
        %464 = vmatpush1.msra.mxu0 %v330
        %465 = vmatprep.subr.mxu0 %v335
        %466 = vmatpush1.msra.mxu0 %v334
        %467 = vmatprep.subr.mxu0 %v339
        %468 = vmatpush1.msra.mxu0 %v338
        %469 = vmatprep.subr.mxu0 %v343
        %470 = vmatpush1.msra.mxu0 %v342
        %471 = vmatprep.subr.mxu0 %v347
        %472 = vmatpush1.msra.mxu0 %v346
        %473 = vmatprep.subr.mxu0 %v351
        %474 = vmatpush1.msra.mxu0 %v350
        %475 = vmatprep.subr.mxu0 %v355
        %476 = vmatpush1.msra.mxu0 %v354
        %477 = vmatprep.subr.mxu0 %v359
        %478 = vmatpush1.msra.mxu0 %v358
        %479 = vmatprep.subr.mxu0 %v363
        %480 = vmatpush1.msra.mxu0 %v362
        %481 = vmatprep.subr.mxu0 %v367
        %482 = vmatpush1.msra.mxu0 %v366
        %483 = vmatprep.subr.mxu0 %v371
        %484 = vmatpush1.msra.mxu0 %v370
        %485 = vmatprep.subr.mxu0 %v375
        %486 = vmatpush1.msra.mxu0 %v374
        %487 = vmatprep.subr.mxu0 %v379
        %488 = vmatpush1.msra.mxu0 %v378
        %489 = vmatprep.subr.mxu0 0.0
        %490 = vmatpush1.msra.mxu0 0.0
        %491 = vmatprep.subr.mxu0 0.0
        %492 = vmatpush1.msra.mxu0 0.0
        %493 = vmatprep.subr.mxu0 0.0
        %494 = vmatpush1.msra.mxu0 0.0
        %495 = vmatprep.subr.mxu0 0.0
        %496 = vmatpush1.msra.mxu0 0.0
        %497 = vmatprep.subr.mxu0 0.0
        %498 = vmatpush1.msra.mxu0 0.0
        %499 = vmatprep.subr.mxu0 0.0
        %500 = vmatpush1.msra.mxu0 0.0
        %501 = vmatprep.subr.mxu0 0.0
        %502 = vmatpush1.msra.mxu0 0.0
        %503 = vmatprep.subr.mxu0 0.0
        %504 = vmatpush1.msra.mxu0 0.0
        %505 = vmatprep.subr.mxu0 0.0
        %506 = vmatpush1.msra.mxu0 0.0
        %507 = vmatprep.subr.mxu0 0.0
        %508 = vmatpush1.msra.mxu0 0.0
        %509 = vmatprep.subr.mxu0 0.0
        %510 = vmatpush1.msra.mxu0 0.0
        %511 = vmatprep.subr.mxu0 0.0
        %512 = vmatpush1.msra.mxu0 0.0
        %513 = vmatprep.subr.mxu0 0.0
        %514 = vmatpush1.msra.mxu0 0.0
        %515 = vmatprep.subr.mxu0 0.0
        %516 = vmatpush1.msra.mxu0 0.0
        %517 = vmatprep.subr.mxu0 0.0
        %518 = vmatpush1.msra.mxu0 0.0
        %519 = vmatprep.subr.mxu0 0.0
        %520 = vmatpush1.msra.mxu0 0.0
        %521 = vmatprep.mubr.f32.mxu0 0.0
        %522 = vmatmul.mubr.f32.gmra.mrb[0].mxu0 %v380
        %v523 = vpop.f32.mrb[0].mxu0
        %v524 = vadd.f32 0.0, %v523
        %v525 = vpop.f32.mrb[0].mxu0
        %v526 = vadd.f32 0.0, %v525
        %527 = vdwg.mxu0
        %v528 = vadd.f32 %v382, %v453
        %v529 = vadd.f32 %v383, %v455
        %v530 = vadd.f32 %v384, %v524
        %v531 = vadd.f32 %v385, %v526
        %v532 = vxor.u32 %v528, 2147483648
        %v533 = vmul.f32 %v532, 1.442695
        %v534 = vpow.pop %v533
        %v535 = vadd.f32 %v534, 1.0
        %v536 = vrcp.pop %v535
        %v537 = vmul.f32 1.0, %v536
        %v538 = vxor.u32 %v529, 2147483648
        %v539 = vmul.f32 %v538, 1.442695
        %v540 = vpow.pop %v539
        %v541 = vadd.f32 %v540, 1.0
        %v542 = vrcp.pop %v541
        %v543 = vmul.f32 1.0, %v542
        %v544 = vtanh.pop %v530
        %v545 = vxor.u32 %v531, 2147483648
        %v546 = vmul.f32 %v545, 1.442695
        %v547 = vpow.pop %v546
        %v548 = vadd.f32 %v547, 1.0
        %v549 = vrcp.pop %v548
        %v550 = vmul.f32 1.0, %v549
        %v551 = vmul.f32 %v543, %v381
        %v552 = vmul.f32 %v537, %v544
        %v553 = vadd.f32 %v551, %v552
        %v554 = vtanh.pop %v553
        %v555 = vmul.f32 %v550, %v554
        %556 = vst [vmem:[#allocation4] sm:$0xff] %v555
        %s557 = scalar_lea.vmem %s267, 32 [#allocation6]
        %v558 = vld [vmem:[%s557] sm:$0xff]
        %v559 = vld [vmem:[%s557 + $0x8] sm:$0xff]
        %v560 = vld [vmem:[%s557 + $0x10] sm:$0xff]
        %v561 = vld [vmem:[%s557 + $0x18] sm:$0xff]
        %562 = vmatprep.subr.mxu0 %v317
        %563 = vmatpush1.msra.mxu0 %v316
        %564 = vmatprep.subr.mxu0 %v321
        %565 = vmatpush1.msra.mxu0 %v320
        %566 = vmatprep.subr.mxu0 %v325
        %567 = vmatpush1.msra.mxu0 %v324
        %568 = vmatprep.subr.mxu0 %v329
        %569 = vmatpush1.msra.mxu0 %v328
        %570 = vmatprep.subr.mxu0 %v333
        %571 = vmatpush1.msra.mxu0 %v332
        %572 = vmatprep.subr.mxu0 %v337
        %573 = vmatpush1.msra.mxu0 %v336
        %574 = vmatprep.subr.mxu0 %v341
        %575 = vmatpush1.msra.mxu0 %v340
        %576 = vmatprep.subr.mxu0 %v345
        %577 = vmatpush1.msra.mxu0 %v344
        %578 = vmatprep.subr.mxu0 %v349
        %579 = vmatpush1.msra.mxu0 %v348
        %580 = vmatprep.subr.mxu0 %v353
        %581 = vmatpush1.msra.mxu0 %v352
        %582 = vmatprep.subr.mxu0 %v357
        %583 = vmatpush1.msra.mxu0 %v356
        %584 = vmatprep.subr.mxu0 %v361
        %585 = vmatpush1.msra.mxu0 %v360
        %586 = vmatprep.subr.mxu0 %v365
        %587 = vmatpush1.msra.mxu0 %v364
        %588 = vmatprep.subr.mxu0 %v369
        %589 = vmatpush1.msra.mxu0 %v368
        %590 = vmatprep.subr.mxu0 %v373
        %591 = vmatpush1.msra.mxu0 %v372
        %592 = vmatprep.subr.mxu0 %v377
        %593 = vmatpush1.msra.mxu0 %v376
        %594 = vmatprep.subr.mxu0 0.0
        %595 = vmatpush1.msra.mxu0 0.0
        %596 = vmatprep.subr.mxu0 0.0
        %597 = vmatpush1.msra.mxu0 0.0
        %598 = vmatprep.subr.mxu0 0.0
        %599 = vmatpush1.msra.mxu0 0.0
        %600 = vmatprep.subr.mxu0 0.0
        %601 = vmatpush1.msra.mxu0 0.0
        %602 = vmatprep.subr.mxu0 0.0
        %603 = vmatpush1.msra.mxu0 0.0
        %604 = vmatprep.subr.mxu0 0.0
        %605 = vmatpush1.msra.mxu0 0.0
        %606 = vmatprep.subr.mxu0 0.0
        %607 = vmatpush1.msra.mxu0 0.0
        %608 = vmatprep.subr.mxu0 0.0
        %609 = vmatpush1.msra.mxu0 0.0
        %610 = vmatprep.subr.mxu0 0.0
        %611 = vmatpush1.msra.mxu0 0.0
        %612 = vmatprep.subr.mxu0 0.0
        %613 = vmatpush1.msra.mxu0 0.0
        %614 = vmatprep.subr.mxu0 0.0
        %615 = vmatpush1.msra.mxu0 0.0
        %616 = vmatprep.subr.mxu0 0.0
        %617 = vmatpush1.msra.mxu0 0.0
        %618 = vmatprep.subr.mxu0 0.0
        %619 = vmatpush1.msra.mxu0 0.0
        %620 = vmatprep.subr.mxu0 0.0
        %621 = vmatpush1.msra.mxu0 0.0
        %622 = vmatprep.subr.mxu0 0.0
        %623 = vmatpush1.msra.mxu0 0.0
        %624 = vmatprep.subr.mxu0 0.0
        %625 = vmatpush1.msra.mxu0 0.0
        %626 = vmatprep.mubr.f32.mxu0 0.0
        %627 = vmatmul.mubr.f32.gmra.mrb[0].mxu0 %v555
        %v628 = vpop.f32.mrb[0].mxu0
        %v629 = vadd.f32 0.0, %v628
        %v630 = vpop.f32.mrb[0].mxu0
        %v631 = vadd.f32 0.0, %v630
        %632 = vdwg.mxu0
        %633 = vmatprep.subr.mxu0 %v319
        %634 = vmatpush1.msra.mxu0 %v318
        %635 = vmatprep.subr.mxu0 %v323
        %636 = vmatpush1.msra.mxu0 %v322
        %637 = vmatprep.subr.mxu0 %v327
        %638 = vmatpush1.msra.mxu0 %v326
        %639 = vmatprep.subr.mxu0 %v331
        %640 = vmatpush1.msra.mxu0 %v330
        %641 = vmatprep.subr.mxu0 %v335
        %642 = vmatpush1.msra.mxu0 %v334
        %643 = vmatprep.subr.mxu0 %v339
        %644 = vmatpush1.msra.mxu0 %v338
        %645 = vmatprep.subr.mxu0 %v343
        %646 = vmatpush1.msra.mxu0 %v342
        %647 = vmatprep.subr.mxu0 %v347
        %648 = vmatpush1.msra.mxu0 %v346
        %649 = vmatprep.subr.mxu0 %v351
        %650 = vmatpush1.msra.mxu0 %v350
        %651 = vmatprep.subr.mxu0 %v355
        %652 = vmatpush1.msra.mxu0 %v354
        %653 = vmatprep.subr.mxu0 %v359
        %654 = vmatpush1.msra.mxu0 %v358
        %655 = vmatprep.subr.mxu0 %v363
        %656 = vmatpush1.msra.mxu0 %v362
        %657 = vmatprep.subr.mxu0 %v367
        %658 = vmatpush1.msra.mxu0 %v366
        %659 = vmatprep.subr.mxu0 %v371
        %660 = vmatpush1.msra.mxu0 %v370
        %661 = vmatprep.subr.mxu0 %v375
        %662 = vmatpush1.msra.mxu0 %v374
        %663 = vmatprep.subr.mxu0 %v379
        %664 = vmatpush1.msra.mxu0 %v378
        %665 = vmatprep.subr.mxu0 0.0
        %666 = vmatpush1.msra.mxu0 0.0
        %667 = vmatprep.subr.mxu0 0.0
        %668 = vmatpush1.msra.mxu0 0.0
        %669 = vmatprep.subr.mxu0 0.0
        %670 = vmatpush1.msra.mxu0 0.0
        %671 = vmatprep.subr.mxu0 0.0
        %672 = vmatpush1.msra.mxu0 0.0
        %673 = vmatprep.subr.mxu0 0.0
        %674 = vmatpush1.msra.mxu0 0.0
        %675 = vmatprep.subr.mxu0 0.0
        %676 = vmatpush1.msra.mxu0 0.0
        %677 = vmatprep.subr.mxu0 0.0
        %678 = vmatpush1.msra.mxu0 0.0
        %679 = vmatprep.subr.mxu0 0.0
        %680 = vmatpush1.msra.mxu0 0.0
        %681 = vmatprep.subr.mxu0 0.0
        %682 = vmatpush1.msra.mxu0 0.0
        %683 = vmatprep.subr.mxu0 0.0
        %684 = vmatpush1.msra.mxu0 0.0
        %685 = vmatprep.subr.mxu0 0.0
        %686 = vmatpush1.msra.mxu0 0.0
        %687 = vmatprep.subr.mxu0 0.0
        %688 = vmatpush1.msra.mxu0 0.0
        %689 = vmatprep.subr.mxu0 0.0
        %690 = vmatpush1.msra.mxu0 0.0
        %691 = vmatprep.subr.mxu0 0.0
        %692 = vmatpush1.msra.mxu0 0.0
        %693 = vmatprep.subr.mxu0 0.0
        %694 = vmatpush1.msra.mxu0 0.0
        %695 = vmatprep.subr.mxu0 0.0
        %696 = vmatpush1.msra.mxu0 0.0
        %697 = vmatprep.mubr.f32.mxu0 0.0
        %698 = vmatmul.mubr.f32.gmra.mrb[0].mxu0 %v555
        %v699 = vpop.f32.mrb[0].mxu0
        %v700 = vadd.f32 0.0, %v699
        %v701 = vpop.f32.mrb[0].mxu0
        %v702 = vadd.f32 0.0, %v701
        %703 = vdwg.mxu0
        %v704 = vadd.f32 %v558, %v629
        %v705 = vadd.f32 %v559, %v631
        %v706 = vadd.f32 %v560, %v700
        %v707 = vadd.f32 %v561, %v702
        %v708 = vxor.u32 %v704, 2147483648
        %v709 = vmul.f32 %v708, 1.442695
        %v710 = vpow.pop %v709
        %v711 = vadd.f32 %v710, 1.0
        %v712 = vrcp.pop %v711
        %v713 = vmul.f32 1.0, %v712
        %v714 = vxor.u32 %v705, 2147483648
        %v715 = vmul.f32 %v714, 1.442695
        %v716 = vpow.pop %v715
        %v717 = vadd.f32 %v716, 1.0
        %v718 = vrcp.pop %v717
        %v719 = vmul.f32 1.0, %v718
        %v720 = vtanh.pop %v706
        %v721 = vxor.u32 %v707, 2147483648
        %v722 = vmul.f32 %v721, 1.442695
        %v723 = vpow.pop %v722
        %v724 = vadd.f32 %v723, 1.0
        %v725 = vrcp.pop %v724
        %v726 = vmul.f32 1.0, %v725
        %v727 = vmul.f32 %v719, %v553
        %v728 = vmul.f32 %v713, %v720
        %v729 = vadd.f32 %v727, %v728
        %v730 = vtanh.pop %v729
        %v731 = vmul.f32 %v726, %v730
        %s732 = scalar_lea.vmem [#allocation4], 8
        %733 = vst [vmem:[%s732] sm:$0xff] %v731
        %s734 = scalar_lea.vmem %s267, 64 [#allocation6]
        %v735 = vld [vmem:[%s734] sm:$0xff]
        %v736 = vld [vmem:[%s734 + $0x8] sm:$0xff]
        %v737 = vld [vmem:[%s734 + $0x10] sm:$0xff]
        %v738 = vld [vmem:[%s734 + $0x18] sm:$0xff]
        %739 = vmatprep.subr.mxu0 %v317
        %740 = vmatpush1.msra.mxu0 %v316
        %741 = vmatprep.subr.mxu0 %v321
        %742 = vmatpush1.msra.mxu0 %v320
        %743 = vmatprep.subr.mxu0 %v325
        %744 = vmatpush1.msra.mxu0 %v324
        %745 = vmatprep.subr.mxu0 %v329
        %746 = vmatpush1.msra.mxu0 %v328
        %747 = vmatprep.subr.mxu0 %v333
        %748 = vmatpush1.msra.mxu0 %v332
        %749 = vmatprep.subr.mxu0 %v337
        %750 = vmatpush1.msra.mxu0 %v336
        %751 = vmatprep.subr.mxu0 %v341
        %752 = vmatpush1.msra.mxu0 %v340
        %753 = vmatprep.subr.mxu0 %v345
        %754 = vmatpush1.msra.mxu0 %v344
        %755 = vmatprep.subr.mxu0 %v349
        %756 = vmatpush1.msra.mxu0 %v348
        %757 = vmatprep.subr.mxu0 %v353
        %758 = vmatpush1.msra.mxu0 %v352
        %759 = vmatprep.subr.mxu0 %v357
        %760 = vmatpush1.msra.mxu0 %v356
        %761 = vmatprep.subr.mxu0 %v361
        %762 = vmatpush1.msra.mxu0 %v360
        %763 = vmatprep.subr.mxu0 %v365
        %764 = vmatpush1.msra.mxu0 %v364
        %765 = vmatprep.subr.mxu0 %v369
        %766 = vmatpush1.msra.mxu0 %v368
        %767 = vmatprep.subr.mxu0 %v373
        %768 = vmatpush1.msra.mxu0 %v372
        %769 = vmatprep.subr.mxu0 %v377
        %770 = vmatpush1.msra.mxu0 %v376
        %771 = vmatprep.subr.mxu0 0.0
        %772 = vmatpush1.msra.mxu0 0.0
        %773 = vmatprep.subr.mxu0 0.0
        %774 = vmatpush1.msra.mxu0 0.0
        %775 = vmatprep.subr.mxu0 0.0
        %776 = vmatpush1.msra.mxu0 0.0
        %777 = vmatprep.subr.mxu0 0.0
        %778 = vmatpush1.msra.mxu0 0.0
        %779 = vmatprep.subr.mxu0 0.0
        %780 = vmatpush1.msra.mxu0 0.0
        %781 = vmatprep.subr.mxu0 0.0
        %782 = vmatpush1.msra.mxu0 0.0
        %783 = vmatprep.subr.mxu0 0.0
        %784 = vmatpush1.msra.mxu0 0.0
        %785 = vmatprep.subr.mxu0 0.0
        %786 = vmatpush1.msra.mxu0 0.0
        %787 = vmatprep.subr.mxu0 0.0
        %788 = vmatpush1.msra.mxu0 0.0
        %789 = vmatprep.subr.mxu0 0.0
        %790 = vmatpush1.msra.mxu0 0.0
        %791 = vmatprep.subr.mxu0 0.0
        %792 = vmatpush1.msra.mxu0 0.0
        %793 = vmatprep.subr.mxu0 0.0
        %794 = vmatpush1.msra.mxu0 0.0
        %795 = vmatprep.subr.mxu0 0.0
        %796 = vmatpush1.msra.mxu0 0.0
        %797 = vmatprep.subr.mxu0 0.0
        %798 = vmatpush1.msra.mxu0 0.0
        %799 = vmatprep.subr.mxu0 0.0
        %800 = vmatpush1.msra.mxu0 0.0
        %801 = vmatprep.subr.mxu0 0.0
        %802 = vmatpush1.msra.mxu0 0.0
        %803 = vmatprep.mubr.f32.mxu0 0.0
        %804 = vmatmul.mubr.f32.gmra.mrb[0].mxu0 %v731
        %v805 = vpop.f32.mrb[0].mxu0
        %v806 = vadd.f32 0.0, %v805
        %v807 = vpop.f32.mrb[0].mxu0
        %v808 = vadd.f32 0.0, %v807
        %809 = vdwg.mxu0
        %810 = vmatprep.subr.mxu0 %v319
        %811 = vmatpush1.msra.mxu0 %v318
        %812 = vmatprep.subr.mxu0 %v323
        %813 = vmatpush1.msra.mxu0 %v322
        %814 = vmatprep.subr.mxu0 %v327
        %815 = vmatpush1.msra.mxu0 %v326
        %816 = vmatprep.subr.mxu0 %v331
        %817 = vmatpush1.msra.mxu0 %v330
        %818 = vmatprep.subr.mxu0 %v335
        %819 = vmatpush1.msra.mxu0 %v334
        %820 = vmatprep.subr.mxu0 %v339
        %821 = vmatpush1.msra.mxu0 %v338
        %822 = vmatprep.subr.mxu0 %v343
        %823 = vmatpush1.msra.mxu0 %v342
        %824 = vmatprep.subr.mxu0 %v347
        %825 = vmatpush1.msra.mxu0 %v346
        %826 = vmatprep.subr.mxu0 %v351
        %827 = vmatpush1.msra.mxu0 %v350
        %828 = vmatprep.subr.mxu0 %v355
        %829 = vmatpush1.msra.mxu0 %v354
        %830 = vmatprep.subr.mxu0 %v359
        %831 = vmatpush1.msra.mxu0 %v358
        %832 = vmatprep.subr.mxu0 %v363
        %833 = vmatpush1.msra.mxu0 %v362
        %834 = vmatprep.subr.mxu0 %v367
        %835 = vmatpush1.msra.mxu0 %v366
        %836 = vmatprep.subr.mxu0 %v371
        %837 = vmatpush1.msra.mxu0 %v370
        %838 = vmatprep.subr.mxu0 %v375
        %839 = vmatpush1.msra.mxu0 %v374
        %840 = vmatprep.subr.mxu0 %v379
        %841 = vmatpush1.msra.mxu0 %v378
        %842 = vmatprep.subr.mxu0 0.0
        %843 = vmatpush1.msra.mxu0 0.0
        %844 = vmatprep.subr.mxu0 0.0
        %845 = vmatpush1.msra.mxu0 0.0
        %846 = vmatprep.subr.mxu0 0.0
        %847 = vmatpush1.msra.mxu0 0.0
        %848 = vmatprep.subr.mxu0 0.0
        %849 = vmatpush1.msra.mxu0 0.0
        %850 = vmatprep.subr.mxu0 0.0
        %851 = vmatpush1.msra.mxu0 0.0
        %852 = vmatprep.subr.mxu0 0.0
        %853 = vmatpush1.msra.mxu0 0.0
        %854 = vmatprep.subr.mxu0 0.0
        %855 = vmatpush1.msra.mxu0 0.0
        %856 = vmatprep.subr.mxu0 0.0
        %857 = vmatpush1.msra.mxu0 0.0
        %858 = vmatprep.subr.mxu0 0.0
        %859 = vmatpush1.msra.mxu0 0.0
        %860 = vmatprep.subr.mxu0 0.0
        %861 = vmatpush1.msra.mxu0 0.0
        %862 = vmatprep.subr.mxu0 0.0
        %863 = vmatpush1.msra.mxu0 0.0
        %864 = vmatprep.subr.mxu0 0.0
        %865 = vmatpush1.msra.mxu0 0.0
        %866 = vmatprep.subr.mxu0 0.0
        %867 = vmatpush1.msra.mxu0 0.0
        %868 = vmatprep.subr.mxu0 0.0
        %869 = vmatpush1.msra.mxu0 0.0
        %870 = vmatprep.subr.mxu0 0.0
        %871 = vmatpush1.msra.mxu0 0.0
        %872 = vmatprep.subr.mxu0 0.0
        %873 = vmatpush1.msra.mxu0 0.0
        %874 = vmatprep.mubr.f32.mxu0 0.0
        %875 = vmatmul.mubr.f32.gmra.mrb[0].mxu0 %v731
        %v876 = vpop.f32.mrb[0].mxu0
        %v877 = vadd.f32 0.0, %v876
        %v878 = vpop.f32.mrb[0].mxu0
        %v879 = vadd.f32 0.0, %v878
        %880 = vdwg.mxu0
        %v881 = vadd.f32 %v735, %v806
        %v882 = vadd.f32 %v736, %v808
        %v883 = vadd.f32 %v737, %v877
        %v884 = vadd.f32 %v738, %v879
        %v885 = vxor.u32 %v881, 2147483648
        %v886 = vmul.f32 %v885, 1.442695
        %v887 = vpow.pop %v886
        %v888 = vadd.f32 %v887, 1.0
        %v889 = vrcp.pop %v888
        %v890 = vmul.f32 1.0, %v889
        %v891 = vxor.u32 %v882, 2147483648
        %v892 = vmul.f32 %v891, 1.442695
        %v893 = vpow.pop %v892
        %v894 = vadd.f32 %v893, 1.0
        %v895 = vrcp.pop %v894
        %v896 = vmul.f32 1.0, %v895
        %v897 = vtanh.pop %v883
        %v898 = vxor.u32 %v884, 2147483648
        %v899 = vmul.f32 %v898, 1.442695
        %v900 = vpow.pop %v899
        %v901 = vadd.f32 %v900, 1.0
        %v902 = vrcp.pop %v901
        %v903 = vmul.f32 1.0, %v902
        %v904 = vmul.f32 %v896, %v729
        %v905 = vmul.f32 %v890, %v897
        %v906 = vadd.f32 %v904, %v905
        %v907 = vtanh.pop %v906
        %v908 = vmul.f32 %v903, %v907
        %s909 = scalar_lea.vmem [#allocation4], 16
        %910 = vst [vmem:[%s909] sm:$0xff] %v908
        %s911 = scalar_lea.vmem %s267, 96 [#allocation6]
        %v912 = vld [vmem:[%s911] sm:$0xff]
        %v913 = vld [vmem:[%s911 + $0x8] sm:$0xff]
        %v914 = vld [vmem:[%s911 + $0x10] sm:$0xff]
        %v915 = vld [vmem:[%s911 + $0x18] sm:$0xff]
        %916 = vmatprep.subr.mxu0 %v317
        %917 = vmatpush1.msra.mxu0 %v316
        %918 = vmatprep.subr.mxu0 %v321
        %919 = vmatpush1.msra.mxu0 %v320
        %920 = vmatprep.subr.mxu0 %v325
        %921 = vmatpush1.msra.mxu0 %v324
        %922 = vmatprep.subr.mxu0 %v329
        %923 = vmatpush1.msra.mxu0 %v328
        %924 = vmatprep.subr.mxu0 %v333
        %925 = vmatpush1.msra.mxu0 %v332
        %926 = vmatprep.subr.mxu0 %v337
        %927 = vmatpush1.msra.mxu0 %v336
        %928 = vmatprep.subr.mxu0 %v341
        %929 = vmatpush1.msra.mxu0 %v340
        %930 = vmatprep.subr.mxu0 %v345
        %931 = vmatpush1.msra.mxu0 %v344
        %932 = vmatprep.subr.mxu0 %v349
        %933 = vmatpush1.msra.mxu0 %v348
        %934 = vmatprep.subr.mxu0 %v353
        %935 = vmatpush1.msra.mxu0 %v352
        %936 = vmatprep.subr.mxu0 %v357
        %937 = vmatpush1.msra.mxu0 %v356
        %938 = vmatprep.subr.mxu0 %v361
        %939 = vmatpush1.msra.mxu0 %v360
        %940 = vmatprep.subr.mxu0 %v365
        %941 = vmatpush1.msra.mxu0 %v364
        %942 = vmatprep.subr.mxu0 %v369
        %943 = vmatpush1.msra.mxu0 %v368
        %944 = vmatprep.subr.mxu0 %v373
        %945 = vmatpush1.msra.mxu0 %v372
        %946 = vmatprep.subr.mxu0 %v377
        %947 = vmatpush1.msra.mxu0 %v376
        %948 = vmatprep.subr.mxu0 0.0
        %949 = vmatpush1.msra.mxu0 0.0
        %950 = vmatprep.subr.mxu0 0.0
        %951 = vmatpush1.msra.mxu0 0.0
        %952 = vmatprep.subr.mxu0 0.0
        %953 = vmatpush1.msra.mxu0 0.0
        %954 = vmatprep.subr.mxu0 0.0
        %955 = vmatpush1.msra.mxu0 0.0
        %956 = vmatprep.subr.mxu0 0.0
        %957 = vmatpush1.msra.mxu0 0.0
        %958 = vmatprep.subr.mxu0 0.0
        %959 = vmatpush1.msra.mxu0 0.0
        %960 = vmatprep.subr.mxu0 0.0
        %961 = vmatpush1.msra.mxu0 0.0
        %962 = vmatprep.subr.mxu0 0.0
        %963 = vmatpush1.msra.mxu0 0.0
        %964 = vmatprep.subr.mxu0 0.0
        %965 = vmatpush1.msra.mxu0 0.0
        %966 = vmatprep.subr.mxu0 0.0
        %967 = vmatpush1.msra.mxu0 0.0
        %968 = vmatprep.subr.mxu0 0.0
        %969 = vmatpush1.msra.mxu0 0.0
        %970 = vmatprep.subr.mxu0 0.0
        %971 = vmatpush1.msra.mxu0 0.0
        %972 = vmatprep.subr.mxu0 0.0
        %973 = vmatpush1.msra.mxu0 0.0
        %974 = vmatprep.subr.mxu0 0.0
        %975 = vmatpush1.msra.mxu0 0.0
        %976 = vmatprep.subr.mxu0 0.0
        %977 = vmatpush1.msra.mxu0 0.0
        %978 = vmatprep.subr.mxu0 0.0
        %979 = vmatpush1.msra.mxu0 0.0
        %980 = vmatprep.mubr.f32.mxu0 0.0
        %981 = vmatmul.mubr.f32.gmra.mrb[0].mxu0 %v908
        %v982 = vpop.f32.mrb[0].mxu0
        %v983 = vadd.f32 0.0, %v982
        %v984 = vpop.f32.mrb[0].mxu0
        %v985 = vadd.f32 0.0, %v984
        %986 = vdwg.mxu0
        %987 = vmatprep.subr.mxu0 %v319
        %988 = vmatpush1.msra.mxu0 %v318
        %989 = vmatprep.subr.mxu0 %v323
        %990 = vmatpush1.msra.mxu0 %v322
        %991 = vmatprep.subr.mxu0 %v327
        %992 = vmatpush1.msra.mxu0 %v326
        %993 = vmatprep.subr.mxu0 %v331
        %994 = vmatpush1.msra.mxu0 %v330
        %995 = vmatprep.subr.mxu0 %v335
        %996 = vmatpush1.msra.mxu0 %v334
        %997 = vmatprep.subr.mxu0 %v339
        %998 = vmatpush1.msra.mxu0 %v338
        %999 = vmatprep.subr.mxu0 %v343
        %1000 = vmatpush1.msra.mxu0 %v342
        %1001 = vmatprep.subr.mxu0 %v347
        %1002 = vmatpush1.msra.mxu0 %v346
        %1003 = vmatprep.subr.mxu0 %v351
        %1004 = vmatpush1.msra.mxu0 %v350
        %1005 = vmatprep.subr.mxu0 %v355
        %1006 = vmatpush1.msra.mxu0 %v354
        %1007 = vmatprep.subr.mxu0 %v359
        %1008 = vmatpush1.msra.mxu0 %v358
        %1009 = vmatprep.subr.mxu0 %v363
        %1010 = vmatpush1.msra.mxu0 %v362
        %1011 = vmatprep.subr.mxu0 %v367
        %1012 = vmatpush1.msra.mxu0 %v366
        %1013 = vmatprep.subr.mxu0 %v371
        %1014 = vmatpush1.msra.mxu0 %v370
        %1015 = vmatprep.subr.mxu0 %v375
        %1016 = vmatpush1.msra.mxu0 %v374
        %1017 = vmatprep.subr.mxu0 %v379
        %1018 = vmatpush1.msra.mxu0 %v378
        %1019 = vmatprep.subr.mxu0 0.0
        %1020 = vmatpush1.msra.mxu0 0.0
        %1021 = vmatprep.subr.mxu0 0.0
        %1022 = vmatpush1.msra.mxu0 0.0
        %1023 = vmatprep.subr.mxu0 0.0
        %1024 = vmatpush1.msra.mxu0 0.0
        %1025 = vmatprep.subr.mxu0 0.0
        %1026 = vmatpush1.msra.mxu0 0.0
        %1027 = vmatprep.subr.mxu0 0.0
        %1028 = vmatpush1.msra.mxu0 0.0
        %1029 = vmatprep.subr.mxu0 0.0
        %1030 = vmatpush1.msra.mxu0 0.0
        %1031 = vmatprep.subr.mxu0 0.0
        %1032 = vmatpush1.msra.mxu0 0.0
        %1033 = vmatprep.subr.mxu0 0.0
        %1034 = vmatpush1.msra.mxu0 0.0
        %1035 = vmatprep.subr.mxu0 0.0
        %1036 = vmatpush1.msra.mxu0 0.0
        %1037 = vmatprep.subr.mxu0 0.0
        %1038 = vmatpush1.msra.mxu0 0.0
        %1039 = vmatprep.subr.mxu0 0.0
        %1040 = vmatpush1.msra.mxu0 0.0
        %1041 = vmatprep.subr.mxu0 0.0
        %1042 = vmatpush1.msra.mxu0 0.0
        %1043 = vmatprep.subr.mxu0 0.0
        %1044 = vmatpush1.msra.mxu0 0.0
        %1045 = vmatprep.subr.mxu0 0.0
        %1046 = vmatpush1.msra.mxu0 0.0
        %1047 = vmatprep.subr.mxu0 0.0
        %1048 = vmatpush1.msra.mxu0 0.0
        %1049 = vmatprep.subr.mxu0 0.0
        %1050 = vmatpush1.msra.mxu0 0.0
        %1051 = vmatprep.mubr.f32.mxu0 0.0
        %1052 = vmatmul.mubr.f32.gmra.mrb[0].mxu0 %v908
        %v1053 = vpop.f32.mrb[0].mxu0
        %v1054 = vadd.f32 0.0, %v1053
        %v1055 = vpop.f32.mrb[0].mxu0
        %v1056 = vadd.f32 0.0, %v1055
        %1057 = vdwg.mxu0
        %v1058 = vadd.f32 %v912, %v983
        %v1059 = vadd.f32 %v913, %v985
        %v1060 = vadd.f32 %v914, %v1054
        %v1061 = vadd.f32 %v915, %v1056
        %v1062 = vxor.u32 %v1058, 2147483648
        %v1063 = vmul.f32 %v1062, 1.442695
        %v1064 = vpow.pop %v1063
        %v1065 = vadd.f32 %v1064, 1.0
        %v1066 = vrcp.pop %v1065
        %v1067 = vmul.f32 1.0, %v1066
        %v1068 = vxor.u32 %v1059, 2147483648
        %v1069 = vmul.f32 %v1068, 1.442695
        %v1070 = vpow.pop %v1069
        %v1071 = vadd.f32 %v1070, 1.0
        %v1072 = vrcp.pop %v1071
        %v1073 = vmul.f32 1.0, %v1072
        %v1074 = vtanh.pop %v1060
        %v1075 = vxor.u32 %v1061, 2147483648
        %v1076 = vmul.f32 %v1075, 1.442695
        %v1077 = vpow.pop %v1076
        %v1078 = vadd.f32 %v1077, 1.0
        %v1079 = vrcp.pop %v1078
        %v1080 = vmul.f32 1.0, %v1079
        %v1081 = vmul.f32 %v1073, %v906
        %v1082 = vmul.f32 %v1067, %v1074
        %v1083 = vadd.f32 %v1081, %v1082
        %v1084 = vtanh.pop %v1083
        %v1085 = vmul.f32 %v1080, %v1084
        %s1086 = scalar_lea.vmem [#allocation4], 24
        %1087 = vst [vmem:[%s1086] sm:$0xff] %v1085
        %1088 = vst [vmem:[#allocation2] sm:$0xff] %v1085
        %1089 = vst [vmem:[#allocation3] sm:$0xff] %v1083
        %v1090 = vld [vmem:[#allocation4] sm:$0xff]
        %v1091 = vld [vmem:[#allocation4 + $0x8] sm:$0xff]
        %v1092 = vld [vmem:[#allocation4 + $0x10] sm:$0xff]
        %v1093 = vld [vmem:[#allocation4 + $0x18] sm:$0xff]
        %v1094 = vld [vmem:[#allocation11] sm:$0xff]
        %v1095 = vld [vmem:[#allocation11 + $0x8] sm:$0xff]
        %v1096 = vld [vmem:[#allocation11 + $0x10] sm:$0xff]
        %v1097 = vld [vmem:[#allocation11 + $0x18] sm:$0xff]
        %v1098 = vld [vmem:[#allocation11 + $0x20] sm:$0xff]
        %v1099 = vld [vmem:[#allocation11 + $0x28] sm:$0xff]
        %v1100 = vld [vmem:[#allocation11 + $0x30] sm:$0xff]
        %v1101 = vld [vmem:[#allocation11 + $0x38] sm:$0xff]
        %v1102 = vld [vmem:[#allocation11 + $0x40] sm:$0xff]
        %v1103 = vld [vmem:[#allocation11 + $0x48] sm:$0xff]
        %v1104 = vld [vmem:[#allocation11 + $0x50] sm:$0xff]
        %v1105 = vld [vmem:[#allocation11 + $0x58] sm:$0xff]
        %v1106 = vld [vmem:[#allocation11 + $0x60] sm:$0xff]
        %v1107 = vld [vmem:[#allocation11 + $0x68] sm:$0xff]
        %v1108 = vld [vmem:[#allocation11 + $0x70] sm:$0xff]
        %v1109 = vld [vmem:[#allocation11 + $0x78] sm:$0xff]
        %v1110 = vld [vmem:[#allocation11 + $0x80] sm:$0xff]
        %v1111 = vld [vmem:[#allocation11 + $0x88] sm:$0xff]
        %v1112 = vld [vmem:[#allocation11 + $0x90] sm:$0xff]
        %v1113 = vld [vmem:[#allocation11 + $0x98] sm:$0xff]
        %v1114 = vld [vmem:[#allocation11 + $0xa0] sm:$0xff]
        %v1115 = vld [vmem:[#allocation11 + $0xa8] sm:$0xff]
        %v1116 = vld [vmem:[#allocation11 + $0xb0] sm:$0xff]
        %v1117 = vld [vmem:[#allocation11 + $0xb8] sm:$0xff]
        %v1118 = vld [vmem:[#allocation11 + $0xc0] sm:$0xff]
        %v1119 = vld [vmem:[#allocation11 + $0xc8] sm:$0xff]
        %v1120 = vld [vmem:[#allocation11 + $0xd0] sm:$0xff]
        %v1121 = vld [vmem:[#allocation11 + $0xd8] sm:$0xff]
        %v1122 = vld [vmem:[#allocation11 + $0xe0] sm:$0xff]
        %v1123 = vld [vmem:[#allocation11 + $0xe8] sm:$0xff]
        %v1124 = vld [vmem:[#allocation11 + $0xf0] sm:$0xff]
        %v1125 = vld [vmem:[#allocation11 + $0xf8] sm:$0xff]
        %v1126 = vld [vmem:[#allocation11 + $0x100] sm:$0xff]
        %v1127 = vld [vmem:[#allocation11 + $0x108] sm:$0xff]
        %v1128 = vld [vmem:[#allocation11 + $0x110] sm:$0xff]
        %v1129 = vld [vmem:[#allocation11 + $0x118] sm:$0xff]
        %v1130 = vld [vmem:[#allocation11 + $0x120] sm:$0xff]
        %v1131 = vld [vmem:[#allocation11 + $0x128] sm:$0xff]
        %v1132 = vld [vmem:[#allocation11 + $0x130] sm:$0xff]
        %v1133 = vld [vmem:[#allocation11 + $0x138] sm:$0xff]
        %v1134 = vld [vmem:[#allocation11 + $0x140] sm:$0xff]
        %v1135 = vld [vmem:[#allocation11 + $0x148] sm:$0xff]
        %v1136 = vld [vmem:[#allocation11 + $0x150] sm:$0xff]
        %v1137 = vld [vmem:[#allocation11 + $0x158] sm:$0xff]
        %v1138 = vld [vmem:[#allocation11 + $0x160] sm:$0xff]
        %v1139 = vld [vmem:[#allocation11 + $0x168] sm:$0xff]
        %v1140 = vld [vmem:[#allocation11 + $0x170] sm:$0xff]
        %v1141 = vld [vmem:[#allocation11 + $0x178] sm:$0xff]
        %v1142 = vld [vmem:[#allocation11 + $0x180] sm:$0xff]
        %v1143 = vld [vmem:[#allocation11 + $0x188] sm:$0xff]
        %v1144 = vld [vmem:[#allocation11 + $0x190] sm:$0xff]
        %v1145 = vld [vmem:[#allocation11 + $0x198] sm:$0xff]
        %v1146 = vld [vmem:[#allocation11 + $0x1a0] sm:$0xff]
        %v1147 = vld [vmem:[#allocation11 + $0x1a8] sm:$0xff]
        %v1148 = vld [vmem:[#allocation11 + $0x1b0] sm:$0xff]
        %v1149 = vld [vmem:[#allocation11 + $0x1b8] sm:$0xff]
        %v1150 = vld [vmem:[#allocation11 + $0x1c0] sm:$0xff]
        %v1151 = vld [vmem:[#allocation11 + $0x1c8] sm:$0xff]
        %v1152 = vld [vmem:[#allocation11 + $0x1d0] sm:$0xff]
        %v1153 = vld [vmem:[#allocation11 + $0x1d8] sm:$0xff]
        %v1154 = vld [vmem:[#allocation11 + $0x1e0] sm:$0xff]
        %v1155 = vld [vmem:[#allocation11 + $0x1e8] sm:$0xff]
        %v1156 = vld [vmem:[#allocation11 + $0x1f0] sm:$0xff]
        %v1157 = vld [vmem:[#allocation11 + $0x1f8] sm:$0xff]
        %v1158 = vld [vmem:[%s4] sm:$0xf]
        %v1160 = vlaneseq
        %v1161 = vshrl.u32 %v1160, 7
        %v1162 = vsub.s32 0, %v1161
        %v1163 = vrot.slane %v1158, %v1162
        %v1164 = vlaneseq
        %v1165 = vshrl.u32 %v1164, 7
        %v1166 = vsub.s32 1, %v1165
        %v1167 = vrot.slane %v1158, %v1166
        %v1168 = vlaneseq
        %v1169 = vshrl.u32 %v1168, 7
        %v1170 = vsub.s32 2, %v1169
        %v1171 = vrot.slane %v1158, %v1170
        %v1172 = vlaneseq
        %v1173 = vshrl.u32 %v1172, 7
        %v1174 = vsub.s32 3, %v1173
        %v1175 = vrot.slane %v1158, %v1174
        %1180 = vmatprep.subr.mxu0 %v1095
        %1181 = vmatpush1.msra.mxu0 %v1094
        %1182 = vmatprep.subr.mxu0 %v1099
        %1183 = vmatpush1.msra.mxu0 %v1098
        %1184 = vmatprep.subr.mxu0 %v1103
        %1185 = vmatpush1.msra.mxu0 %v1102
        %1186 = vmatprep.subr.mxu0 %v1107
        %1187 = vmatpush1.msra.mxu0 %v1106
        %1188 = vmatprep.subr.mxu0 %v1111
        %1189 = vmatpush1.msra.mxu0 %v1110
        %1190 = vmatprep.subr.mxu0 %v1115
        %1191 = vmatpush1.msra.mxu0 %v1114
        %1192 = vmatprep.subr.mxu0 %v1119
        %1193 = vmatpush1.msra.mxu0 %v1118
        %1194 = vmatprep.subr.mxu0 %v1123
        %1195 = vmatpush1.msra.mxu0 %v1122
        %1196 = vmatprep.subr.mxu0 %v1127
        %1197 = vmatpush1.msra.mxu0 %v1126
        %1198 = vmatprep.subr.mxu0 %v1131
        %1199 = vmatpush1.msra.mxu0 %v1130
        %1200 = vmatprep.subr.mxu0 %v1135
        %1201 = vmatpush1.msra.mxu0 %v1134
        %1202 = vmatprep.subr.mxu0 %v1139
        %1203 = vmatpush1.msra.mxu0 %v1138
        %1204 = vmatprep.subr.mxu0 %v1143
        %1205 = vmatpush1.msra.mxu0 %v1142
        %1206 = vmatprep.subr.mxu0 %v1147
        %1207 = vmatpush1.msra.mxu0 %v1146
        %1208 = vmatprep.subr.mxu0 %v1151
        %1209 = vmatpush1.msra.mxu0 %v1150
        %1210 = vmatprep.subr.mxu0 %v1155
        %1211 = vmatpush1.msra.mxu0 %v1154
        %1212 = vmatprep.subr.mxu0 0.0
        %1213 = vmatpush1.msra.mxu0 0.0
        %1214 = vmatprep.subr.mxu0 0.0
        %1215 = vmatpush1.msra.mxu0 0.0
        %1216 = vmatprep.subr.mxu0 0.0
        %1217 = vmatpush1.msra.mxu0 0.0
        %1218 = vmatprep.subr.mxu0 0.0
        %1219 = vmatpush1.msra.mxu0 0.0
        %1220 = vmatprep.subr.mxu0 0.0
        %1221 = vmatpush1.msra.mxu0 0.0
        %1222 = vmatprep.subr.mxu0 0.0
        %1223 = vmatpush1.msra.mxu0 0.0
        %1224 = vmatprep.subr.mxu0 0.0
        %1225 = vmatpush1.msra.mxu0 0.0
        %1226 = vmatprep.subr.mxu0 0.0
        %1227 = vmatpush1.msra.mxu0 0.0
        %1228 = vmatprep.subr.mxu0 0.0
        %1229 = vmatpush1.msra.mxu0 0.0
        %1230 = vmatprep.subr.mxu0 0.0
        %1231 = vmatpush1.msra.mxu0 0.0
        %1232 = vmatprep.subr.mxu0 0.0
        %1233 = vmatpush1.msra.mxu0 0.0
        %1234 = vmatprep.subr.mxu0 0.0
        %1235 = vmatpush1.msra.mxu0 0.0
        %1236 = vmatprep.subr.mxu0 0.0
        %1237 = vmatpush1.msra.mxu0 0.0
        %1238 = vmatprep.subr.mxu0 0.0
        %1239 = vmatpush1.msra.mxu0 0.0
        %1240 = vmatprep.subr.mxu0 0.0
        %1241 = vmatpush1.msra.mxu0 0.0
        %1242 = vmatprep.subr.mxu0 0.0
        %1243 = vmatpush1.msra.mxu0 0.0
        %1244 = vmatprep.mubr.f32.mxu0 0.0
        %1245 = vmatmul.mubr.f32.gmra.mrb[0].mxu0 %v1090
        %v1246 = vpop.f32.mrb[0].mxu0
        %v1247 = vadd.f32 %v1163, %v1246
        %v1248 = vpop.f32.mrb[0].mxu0
        %v1249 = vadd.f32 %v1167, %v1248
        %1250 = vmatprep.mubr.f32.mxu0 0.0
        %1251 = vmatmul.mubr.f32.gmra.mrb[0].mxu0 %v1091
        %v1252 = vpop.f32.mrb[0].mxu0
        %v1253 = vadd.f32 %v1163, %v1252
        %v1254 = vpop.f32.mrb[0].mxu0
        %v1255 = vadd.f32 %v1167, %v1254
        %1256 = vmatprep.mubr.f32.mxu0 0.0
        %1257 = vmatmul.mubr.f32.gmra.mrb[0].mxu0 %v1092
        %v1258 = vpop.f32.mrb[0].mxu0
        %v1259 = vadd.f32 %v1163, %v1258
        %v1260 = vpop.f32.mrb[0].mxu0
        %v1261 = vadd.f32 %v1167, %v1260
        %1262 = vmatprep.mubr.f32.mxu0 0.0
        %1263 = vmatmul.mubr.f32.gmra.mrb[0].mxu0 %v1093
        %v1264 = vpop.f32.mrb[0].mxu0
        %v1265 = vadd.f32 %v1163, %v1264
        %v1266 = vpop.f32.mrb[0].mxu0
        %v1267 = vadd.f32 %v1167, %v1266
        %1268 = vdwg.mxu0
        %1269 = vmatprep.subr.mxu0 %v1097
        %1270 = vmatpush1.msra.mxu0 %v1096
        %1271 = vmatprep.subr.mxu0 %v1101
        %1272 = vmatpush1.msra.mxu0 %v1100
        %1273 = vmatprep.subr.mxu0 %v1105
        %1274 = vmatpush1.msra.mxu0 %v1104
        %1275 = vmatprep.subr.mxu0 %v1109
        %1276 = vmatpush1.msra.mxu0 %v1108
        %1277 = vmatprep.subr.mxu0 %v1113
        %1278 = vmatpush1.msra.mxu0 %v1112
        %1279 = vmatprep.subr.mxu0 %v1117
        %1280 = vmatpush1.msra.mxu0 %v1116
        %1281 = vmatprep.subr.mxu0 %v1121
        %1282 = vmatpush1.msra.mxu0 %v1120
        %1283 = vmatprep.subr.mxu0 %v1125
        %1284 = vmatpush1.msra.mxu0 %v1124
        %1285 = vmatprep.subr.mxu0 %v1129
        %1286 = vmatpush1.msra.mxu0 %v1128
        %1287 = vmatprep.subr.mxu0 %v1133
        %1288 = vmatpush1.msra.mxu0 %v1132
        %1289 = vmatprep.subr.mxu0 %v1137
        %1290 = vmatpush1.msra.mxu0 %v1136
        %1291 = vmatprep.subr.mxu0 %v1141
        %1292 = vmatpush1.msra.mxu0 %v1140
        %1293 = vmatprep.subr.mxu0 %v1145
        %1294 = vmatpush1.msra.mxu0 %v1144
        %1295 = vmatprep.subr.mxu0 %v1149
        %1296 = vmatpush1.msra.mxu0 %v1148
        %1297 = vmatprep.subr.mxu0 %v1153
        %1298 = vmatpush1.msra.mxu0 %v1152
        %1299 = vmatprep.subr.mxu0 %v1157
        %1300 = vmatpush1.msra.mxu0 %v1156
        %1301 = vmatprep.subr.mxu0 0.0
        %1302 = vmatpush1.msra.mxu0 0.0
        %1303 = vmatprep.subr.mxu0 0.0
        %1304 = vmatpush1.msra.mxu0 0.0
        %1305 = vmatprep.subr.mxu0 0.0
        %1306 = vmatpush1.msra.mxu0 0.0
        %1307 = vmatprep.subr.mxu0 0.0
        %1308 = vmatpush1.msra.mxu0 0.0
        %1309 = vmatprep.subr.mxu0 0.0
        %1310 = vmatpush1.msra.mxu0 0.0
        %1311 = vmatprep.subr.mxu0 0.0
        %1312 = vmatpush1.msra.mxu0 0.0
        %1313 = vmatprep.subr.mxu0 0.0
        %1314 = vmatpush1.msra.mxu0 0.0
        %1315 = vmatprep.subr.mxu0 0.0
        %1316 = vmatpush1.msra.mxu0 0.0
        %1317 = vmatprep.subr.mxu0 0.0
        %1318 = vmatpush1.msra.mxu0 0.0
        %1319 = vmatprep.subr.mxu0 0.0
        %1320 = vmatpush1.msra.mxu0 0.0
        %1321 = vmatprep.subr.mxu0 0.0
        %1322 = vmatpush1.msra.mxu0 0.0
        %1323 = vmatprep.subr.mxu0 0.0
        %1324 = vmatpush1.msra.mxu0 0.0
        %1325 = vmatprep.subr.mxu0 0.0
        %1326 = vmatpush1.msra.mxu0 0.0
        %1327 = vmatprep.subr.mxu0 0.0
        %1328 = vmatpush1.msra.mxu0 0.0
        %1329 = vmatprep.subr.mxu0 0.0
        %1330 = vmatpush1.msra.mxu0 0.0
        %1331 = vmatprep.subr.mxu0 0.0
        %1332 = vmatpush1.msra.mxu0 0.0
        %1333 = vmatprep.mubr.f32.mxu0 0.0
        %1334 = vmatmul.mubr.f32.gmra.mrb[0].mxu0 %v1090
        %v1335 = vpop.f32.mrb[0].mxu0
        %v1336 = vadd.f32 %v1171, %v1335
        %v1337 = vpop.f32.mrb[0].mxu0
        %v1338 = vadd.f32 %v1175, %v1337
        %1339 = vmatprep.mubr.f32.mxu0 0.0
        %1340 = vmatmul.mubr.f32.gmra.mrb[0].mxu0 %v1091
        %v1341 = vpop.f32.mrb[0].mxu0
        %v1342 = vadd.f32 %v1171, %v1341
        %v1343 = vpop.f32.mrb[0].mxu0
        %v1344 = vadd.f32 %v1175, %v1343
        %1345 = vmatprep.mubr.f32.mxu0 0.0
        %1346 = vmatmul.mubr.f32.gmra.mrb[0].mxu0 %v1092
        %v1347 = vpop.f32.mrb[0].mxu0
        %v1348 = vadd.f32 %v1171, %v1347
        %v1349 = vpop.f32.mrb[0].mxu0
        %v1350 = vadd.f32 %v1175, %v1349
        %1351 = vmatprep.mubr.f32.mxu0 0.0
        %1352 = vmatmul.mubr.f32.gmra.mrb[0].mxu0 %v1093
        %v1353 = vpop.f32.mrb[0].mxu0
        %v1354 = vadd.f32 %v1171, %v1353
        %v1355 = vpop.f32.mrb[0].mxu0
        %v1356 = vadd.f32 %v1175, %v1355
        %1357 = vdwg.mxu0
        %1358 = vst [vmem:[#allocation5] sm:$0xff] %v1247
        %1359 = vst [vmem:[#allocation5 + $0x8] sm:$0xff] %v1249
        %1360 = vst [vmem:[#allocation5 + $0x10] sm:$0xff] %v1336
        %1361 = vst [vmem:[#allocation5 + $0x18] sm:$0xff] %v1338
        %1362 = vst [vmem:[#allocation5 + $0x20] sm:$0xff] %v1253
        %1363 = vst [vmem:[#allocation5 + $0x28] sm:$0xff] %v1255
        %1364 = vst [vmem:[#allocation5 + $0x30] sm:$0xff] %v1342
        %1365 = vst [vmem:[#allocation5 + $0x38] sm:$0xff] %v1344
        %1366 = vst [vmem:[#allocation5 + $0x40] sm:$0xff] %v1259
        %1367 = vst [vmem:[#allocation5 + $0x48] sm:$0xff] %v1261
        %1368 = vst [vmem:[#allocation5 + $0x50] sm:$0xff] %v1348
        %1369 = vst [vmem:[#allocation5 + $0x58] sm:$0xff] %v1350
        %1370 = vst [vmem:[#allocation5 + $0x60] sm:$0xff] %v1265
        %1371 = vst [vmem:[#allocation5 + $0x68] sm:$0xff] %v1267
        %1372 = vst [vmem:[#allocation5 + $0x70] sm:$0xff] %v1354
        %1373 = vst [vmem:[#allocation5 + $0x78] sm:$0xff] %v1356
        %v1374 = vld [vmem:[#allocation12] sm:$0xff]
        %v1375 = vld [vmem:[#allocation12 + $0x8] sm:$0xff]
        %v1376 = vld [vmem:[#allocation12 + $0x10] sm:$0xff]
        %v1377 = vld [vmem:[#allocation12 + $0x18] sm:$0xff]
        %v1378 = vld [vmem:[#allocation12 + $0x20] sm:$0xff]
        %v1379 = vld [vmem:[#allocation12 + $0x28] sm:$0xff]
        %v1380 = vld [vmem:[#allocation12 + $0x30] sm:$0xff]
        %v1381 = vld [vmem:[#allocation12 + $0x38] sm:$0xff]
        %v1382 = vld [vmem:[#allocation12 + $0x40] sm:$0xff]
        %v1383 = vld [vmem:[#allocation12 + $0x48] sm:$0xff]
        %v1384 = vld [vmem:[#allocation12 + $0x50] sm:$0xff]
        %v1385 = vld [vmem:[#allocation12 + $0x58] sm:$0xff]
        %v1386 = vld [vmem:[#allocation12 + $0x60] sm:$0xff]
        %v1387 = vld [vmem:[#allocation12 + $0x68] sm:$0xff]
        %v1388 = vld [vmem:[#allocation12 + $0x70] sm:$0xff]
        %v1389 = vld [vmem:[#allocation12 + $0x78] sm:$0xff]
        %v1390 = vld [vmem:[#allocation12 + $0x80] sm:$0xff]
        %v1391 = vld [vmem:[#allocation12 + $0x88] sm:$0xff]
        %v1392 = vld [vmem:[#allocation12 + $0x90] sm:$0xff]
        %v1393 = vld [vmem:[#allocation12 + $0x98] sm:$0xff]
        %v1394 = vld [vmem:[#allocation12 + $0xa0] sm:$0xff]
        %v1395 = vld [vmem:[#allocation12 + $0xa8] sm:$0xff]
        %v1396 = vld [vmem:[#allocation12 + $0xb0] sm:$0xff]
        %v1397 = vld [vmem:[#allocation12 + $0xb8] sm:$0xff]
        %v1398 = vld [vmem:[#allocation12 + $0xc0] sm:$0xff]
        %v1399 = vld [vmem:[#allocation12 + $0xc8] sm:$0xff]
        %v1400 = vld [vmem:[#allocation12 + $0xd0] sm:$0xff]
        %v1401 = vld [vmem:[#allocation12 + $0xd8] sm:$0xff]
        %v1402 = vld [vmem:[#allocation12 + $0xe0] sm:$0xff]
        %v1403 = vld [vmem:[#allocation12 + $0xe8] sm:$0xff]
        %v1404 = vld [vmem:[#allocation12 + $0xf0] sm:$0xff]
        %v1405 = vld [vmem:[#allocation12 + $0xf8] sm:$0xff]
        %v1406 = vld [vmem:[#allocation12 + $0x100] sm:$0xff]
        %v1407 = vld [vmem:[#allocation12 + $0x108] sm:$0xff]
        %v1408 = vld [vmem:[#allocation12 + $0x110] sm:$0xff]
        %v1409 = vld [vmem:[#allocation12 + $0x118] sm:$0xff]
        %v1410 = vld [vmem:[#allocation12 + $0x120] sm:$0xff]
        %v1411 = vld [vmem:[#allocation12 + $0x128] sm:$0xff]
        %v1412 = vld [vmem:[#allocation12 + $0x130] sm:$0xff]
        %v1413 = vld [vmem:[#allocation12 + $0x138] sm:$0xff]
        %v1414 = vld [vmem:[#allocation12 + $0x140] sm:$0xff]
        %v1415 = vld [vmem:[#allocation12 + $0x148] sm:$0xff]
        %v1416 = vld [vmem:[#allocation12 + $0x150] sm:$0xff]
        %v1417 = vld [vmem:[#allocation12 + $0x158] sm:$0xff]
        %v1418 = vld [vmem:[#allocation12 + $0x160] sm:$0xff]
        %v1419 = vld [vmem:[#allocation12 + $0x168] sm:$0xff]
        %v1420 = vld [vmem:[#allocation12 + $0x170] sm:$0xff]
        %v1421 = vld [vmem:[#allocation12 + $0x178] sm:$0xff]
        %v1422 = vld [vmem:[#allocation12 + $0x180] sm:$0xff]
        %v1423 = vld [vmem:[#allocation12 + $0x188] sm:$0xff]
        %v1424 = vld [vmem:[#allocation12 + $0x190] sm:$0xff]
        %v1425 = vld [vmem:[#allocation12 + $0x198] sm:$0xff]
        %v1426 = vld [vmem:[#allocation12 + $0x1a0] sm:$0xff]
        %v1427 = vld [vmem:[#allocation12 + $0x1a8] sm:$0xff]
        %v1428 = vld [vmem:[#allocation12 + $0x1b0] sm:$0xff]
        %v1429 = vld [vmem:[#allocation12 + $0x1b8] sm:$0xff]
        %v1430 = vld [vmem:[#allocation12 + $0x1c0] sm:$0xff]
        %v1431 = vld [vmem:[#allocation12 + $0x1c8] sm:$0xff]
        %v1432 = vld [vmem:[#allocation12 + $0x1d0] sm:$0xff]
        %v1433 = vld [vmem:[#allocation12 + $0x1d8] sm:$0xff]
        %v1434 = vld [vmem:[#allocation12 + $0x1e0] sm:$0xff]
        %v1435 = vld [vmem:[#allocation12 + $0x1e8] sm:$0xff]
        %v1436 = vld [vmem:[#allocation12 + $0x1f0] sm:$0xff]
        %v1437 = vld [vmem:[#allocation12 + $0x1f8] sm:$0xff]
        %s1438 = scalar_lea.vmem [#allocation2], 8
        %v1439 = vld [vmem:[%s1438] sm:$0xff]
        %s1440 = scalar_lea.vmem [#allocation3], 8
        %v1441 = vld [vmem:[%s1440] sm:$0xff]
        %v1442 = vld [vmem:[#allocation5] sm:$0xff]
        %v1443 = vld [vmem:[#allocation5 + $0x8] sm:$0xff]
        %v1444 = vld [vmem:[#allocation5 + $0x10] sm:$0xff]
        %v1445 = vld [vmem:[#allocation5 + $0x18] sm:$0xff]
        %1446 = vmatprep.subr.mxu0 %v1375
        %1447 = vmatpush1.msra.mxu0 %v1374
        %1448 = vmatprep.subr.mxu0 %v1379
        %1449 = vmatpush1.msra.mxu0 %v1378
        %1450 = vmatprep.subr.mxu0 %v1383
        %1451 = vmatpush1.msra.mxu0 %v1382
        %1452 = vmatprep.subr.mxu0 %v1387
        %1453 = vmatpush1.msra.mxu0 %v1386
        %1454 = vmatprep.subr.mxu0 %v1391
        %1455 = vmatpush1.msra.mxu0 %v1390
        %1456 = vmatprep.subr.mxu0 %v1395
        %1457 = vmatpush1.msra.mxu0 %v1394
        %1458 = vmatprep.subr.mxu0 %v1399
        %1459 = vmatpush1.msra.mxu0 %v1398
        %1460 = vmatprep.subr.mxu0 %v1403
        %1461 = vmatpush1.msra.mxu0 %v1402
        %1462 = vmatprep.subr.mxu0 %v1407
        %1463 = vmatpush1.msra.mxu0 %v1406
        %1464 = vmatprep.subr.mxu0 %v1411
        %1465 = vmatpush1.msra.mxu0 %v1410
        %1466 = vmatprep.subr.mxu0 %v1415
        %1467 = vmatpush1.msra.mxu0 %v1414
        %1468 = vmatprep.subr.mxu0 %v1419
        %1469 = vmatpush1.msra.mxu0 %v1418
        %1470 = vmatprep.subr.mxu0 %v1423
        %1471 = vmatpush1.msra.mxu0 %v1422
        %1472 = vmatprep.subr.mxu0 %v1427
        %1473 = vmatpush1.msra.mxu0 %v1426
        %1474 = vmatprep.subr.mxu0 %v1431
        %1475 = vmatpush1.msra.mxu0 %v1430
        %1476 = vmatprep.subr.mxu0 %v1435
        %1477 = vmatpush1.msra.mxu0 %v1434
        %1478 = vmatprep.subr.mxu0 0.0
        %1479 = vmatpush1.msra.mxu0 0.0
        %1480 = vmatprep.subr.mxu0 0.0
        %1481 = vmatpush1.msra.mxu0 0.0
        %1482 = vmatprep.subr.mxu0 0.0
        %1483 = vmatpush1.msra.mxu0 0.0
        %1484 = vmatprep.subr.mxu0 0.0
        %1485 = vmatpush1.msra.mxu0 0.0
        %1486 = vmatprep.subr.mxu0 0.0
        %1487 = vmatpush1.msra.mxu0 0.0
        %1488 = vmatprep.subr.mxu0 0.0
        %1489 = vmatpush1.msra.mxu0 0.0
        %1490 = vmatprep.subr.mxu0 0.0
        %1491 = vmatpush1.msra.mxu0 0.0
        %1492 = vmatprep.subr.mxu0 0.0
        %1493 = vmatpush1.msra.mxu0 0.0
        %1494 = vmatprep.subr.mxu0 0.0
        %1495 = vmatpush1.msra.mxu0 0.0
        %1496 = vmatprep.subr.mxu0 0.0
        %1497 = vmatpush1.msra.mxu0 0.0
        %1498 = vmatprep.subr.mxu0 0.0
        %1499 = vmatpush1.msra.mxu0 0.0
        %1500 = vmatprep.subr.mxu0 0.0
        %1501 = vmatpush1.msra.mxu0 0.0
        %1502 = vmatprep.subr.mxu0 0.0
        %1503 = vmatpush1.msra.mxu0 0.0
        %1504 = vmatprep.subr.mxu0 0.0
        %1505 = vmatpush1.msra.mxu0 0.0
        %1506 = vmatprep.subr.mxu0 0.0
        %1507 = vmatpush1.msra.mxu0 0.0
        %1508 = vmatprep.subr.mxu0 0.0
        %1509 = vmatpush1.msra.mxu0 0.0
        %1510 = vmatprep.mubr.f32.mxu0 0.0
        %1511 = vmatmul.mubr.f32.gmra.mrb[0].mxu0 %v1439
        %v1512 = vpop.f32.mrb[0].mxu0
        %v1513 = vadd.f32 0.0, %v1512
        %v1514 = vpop.f32.mrb[0].mxu0
        %v1515 = vadd.f32 0.0, %v1514
        %1516 = vdwg.mxu0
        %1517 = vmatprep.subr.mxu0 %v1377
        %1518 = vmatpush1.msra.mxu0 %v1376
        %1519 = vmatprep.subr.mxu0 %v1381
        %1520 = vmatpush1.msra.mxu0 %v1380
        %1521 = vmatprep.subr.mxu0 %v1385
        %1522 = vmatpush1.msra.mxu0 %v1384
        %1523 = vmatprep.subr.mxu0 %v1389
        %1524 = vmatpush1.msra.mxu0 %v1388
        %1525 = vmatprep.subr.mxu0 %v1393
        %1526 = vmatpush1.msra.mxu0 %v1392
        %1527 = vmatprep.subr.mxu0 %v1397
        %1528 = vmatpush1.msra.mxu0 %v1396
        %1529 = vmatprep.subr.mxu0 %v1401
        %1530 = vmatpush1.msra.mxu0 %v1400
        %1531 = vmatprep.subr.mxu0 %v1405
        %1532 = vmatpush1.msra.mxu0 %v1404
        %1533 = vmatprep.subr.mxu0 %v1409
        %1534 = vmatpush1.msra.mxu0 %v1408
        %1535 = vmatprep.subr.mxu0 %v1413
        %1536 = vmatpush1.msra.mxu0 %v1412
        %1537 = vmatprep.subr.mxu0 %v1417
        %1538 = vmatpush1.msra.mxu0 %v1416
        %1539 = vmatprep.subr.mxu0 %v1421
        %1540 = vmatpush1.msra.mxu0 %v1420
        %1541 = vmatprep.subr.mxu0 %v1425
        %1542 = vmatpush1.msra.mxu0 %v1424
        %1543 = vmatprep.subr.mxu0 %v1429
        %1544 = vmatpush1.msra.mxu0 %v1428
        %1545 = vmatprep.subr.mxu0 %v1433
        %1546 = vmatpush1.msra.mxu0 %v1432
        %1547 = vmatprep.subr.mxu0 %v1437
        %1548 = vmatpush1.msra.mxu0 %v1436
        %1549 = vmatprep.subr.mxu0 0.0
        %1550 = vmatpush1.msra.mxu0 0.0
        %1551 = vmatprep.subr.mxu0 0.0
        %1552 = vmatpush1.msra.mxu0 0.0
        %1553 = vmatprep.subr.mxu0 0.0
        %1554 = vmatpush1.msra.mxu0 0.0
        %1555 = vmatprep.subr.mxu0 0.0
        %1556 = vmatpush1.msra.mxu0 0.0
        %1557 = vmatprep.subr.mxu0 0.0
        %1558 = vmatpush1.msra.mxu0 0.0
        %1559 = vmatprep.subr.mxu0 0.0
        %1560 = vmatpush1.msra.mxu0 0.0
        %1561 = vmatprep.subr.mxu0 0.0
        %1562 = vmatpush1.msra.mxu0 0.0
        %1563 = vmatprep.subr.mxu0 0.0
        %1564 = vmatpush1.msra.mxu0 0.0
        %1565 = vmatprep.subr.mxu0 0.0
        %1566 = vmatpush1.msra.mxu0 0.0
        %1567 = vmatprep.subr.mxu0 0.0
        %1568 = vmatpush1.msra.mxu0 0.0
        %1569 = vmatprep.subr.mxu0 0.0
        %1570 = vmatpush1.msra.mxu0 0.0
        %1571 = vmatprep.subr.mxu0 0.0
        %1572 = vmatpush1.msra.mxu0 0.0
        %1573 = vmatprep.subr.mxu0 0.0
        %1574 = vmatpush1.msra.mxu0 0.0
        %1575 = vmatprep.subr.mxu0 0.0
        %1576 = vmatpush1.msra.mxu0 0.0
        %1577 = vmatprep.subr.mxu0 0.0
        %1578 = vmatpush1.msra.mxu0 0.0
        %1579 = vmatprep.subr.mxu0 0.0
        %1580 = vmatpush1.msra.mxu0 0.0
        %1581 = vmatprep.mubr.f32.mxu0 0.0
        %1582 = vmatmul.mubr.f32.gmra.mrb[0].mxu0 %v1439
        %v1583 = vpop.f32.mrb[0].mxu0
        %v1584 = vadd.f32 0.0, %v1583
        %v1585 = vpop.f32.mrb[0].mxu0
        %v1586 = vadd.f32 0.0, %v1585
        %1587 = vdwg.mxu0
        %v1588 = vadd.f32 %v1442, %v1513
        %v1589 = vadd.f32 %v1443, %v1515
        %v1590 = vadd.f32 %v1444, %v1584
        %v1591 = vadd.f32 %v1445, %v1586
        %v1592 = vxor.u32 %v1588, 2147483648
        %v1593 = vmul.f32 %v1592, 1.442695
        %v1594 = vpow.pop %v1593
        %v1595 = vadd.f32 %v1594, 1.0
        %v1596 = vrcp.pop %v1595
        %v1597 = vmul.f32 1.0, %v1596
        %v1598 = vxor.u32 %v1589, 2147483648
        %v1599 = vmul.f32 %v1598, 1.442695
        %v1600 = vpow.pop %v1599
        %v1601 = vadd.f32 %v1600, 1.0
        %v1602 = vrcp.pop %v1601
        %v1603 = vmul.f32 1.0, %v1602
        %v1604 = vtanh.pop %v1590
        %v1605 = vxor.u32 %v1591, 2147483648
        %v1606 = vmul.f32 %v1605, 1.442695
        %v1607 = vpow.pop %v1606
        %v1608 = vadd.f32 %v1607, 1.0
        %v1609 = vrcp.pop %v1608
        %v1610 = vmul.f32 1.0, %v1609
        %v1611 = vmul.f32 %v1603, %v1441
        %v1612 = vmul.f32 %v1597, %v1604
        %v1613 = vadd.f32 %v1611, %v1612
        %v1614 = vtanh.pop %v1613
        %v1615 = vmul.f32 %v1610, %v1614
        %1616 = vst [vmem:[%s305] sm:$0xff] %v1615
        %s1617 = scalar_lea.vmem [#allocation5], 32
        %v1618 = vld [vmem:[%s1617] sm:$0xff]
        %v1619 = vld [vmem:[%s1617 + $0x8] sm:$0xff]
        %v1620 = vld [vmem:[%s1617 + $0x10] sm:$0xff]
        %v1621 = vld [vmem:[%s1617 + $0x18] sm:$0xff]
        %1622 = vmatprep.subr.mxu0 %v1375
        %1623 = vmatpush1.msra.mxu0 %v1374
        %1624 = vmatprep.subr.mxu0 %v1379
        %1625 = vmatpush1.msra.mxu0 %v1378
        %1626 = vmatprep.subr.mxu0 %v1383
        %1627 = vmatpush1.msra.mxu0 %v1382
        %1628 = vmatprep.subr.mxu0 %v1387
        %1629 = vmatpush1.msra.mxu0 %v1386
        %1630 = vmatprep.subr.mxu0 %v1391
        %1631 = vmatpush1.msra.mxu0 %v1390
        %1632 = vmatprep.subr.mxu0 %v1395
        %1633 = vmatpush1.msra.mxu0 %v1394
        %1634 = vmatprep.subr.mxu0 %v1399
        %1635 = vmatpush1.msra.mxu0 %v1398
        %1636 = vmatprep.subr.mxu0 %v1403
        %1637 = vmatpush1.msra.mxu0 %v1402
        %1638 = vmatprep.subr.mxu0 %v1407
        %1639 = vmatpush1.msra.mxu0 %v1406
        %1640 = vmatprep.subr.mxu0 %v1411
        %1641 = vmatpush1.msra.mxu0 %v1410
        %1642 = vmatprep.subr.mxu0 %v1415
        %1643 = vmatpush1.msra.mxu0 %v1414
        %1644 = vmatprep.subr.mxu0 %v1419
        %1645 = vmatpush1.msra.mxu0 %v1418
        %1646 = vmatprep.subr.mxu0 %v1423
        %1647 = vmatpush1.msra.mxu0 %v1422
        %1648 = vmatprep.subr.mxu0 %v1427
        %1649 = vmatpush1.msra.mxu0 %v1426
        %1650 = vmatprep.subr.mxu0 %v1431
        %1651 = vmatpush1.msra.mxu0 %v1430
        %1652 = vmatprep.subr.mxu0 %v1435
        %1653 = vmatpush1.msra.mxu0 %v1434
        %1654 = vmatprep.subr.mxu0 0.0
        %1655 = vmatpush1.msra.mxu0 0.0
        %1656 = vmatprep.subr.mxu0 0.0
        %1657 = vmatpush1.msra.mxu0 0.0
        %1658 = vmatprep.subr.mxu0 0.0
        %1659 = vmatpush1.msra.mxu0 0.0
        %1660 = vmatprep.subr.mxu0 0.0
        %1661 = vmatpush1.msra.mxu0 0.0
        %1662 = vmatprep.subr.mxu0 0.0
        %1663 = vmatpush1.msra.mxu0 0.0
        %1664 = vmatprep.subr.mxu0 0.0
        %1665 = vmatpush1.msra.mxu0 0.0
        %1666 = vmatprep.subr.mxu0 0.0
        %1667 = vmatpush1.msra.mxu0 0.0
        %1668 = vmatprep.subr.mxu0 0.0
        %1669 = vmatpush1.msra.mxu0 0.0
        %1670 = vmatprep.subr.mxu0 0.0
        %1671 = vmatpush1.msra.mxu0 0.0
        %1672 = vmatprep.subr.mxu0 0.0
        %1673 = vmatpush1.msra.mxu0 0.0
        %1674 = vmatprep.subr.mxu0 0.0
        %1675 = vmatpush1.msra.mxu0 0.0
        %1676 = vmatprep.subr.mxu0 0.0
        %1677 = vmatpush1.msra.mxu0 0.0
        %1678 = vmatprep.subr.mxu0 0.0
        %1679 = vmatpush1.msra.mxu0 0.0
        %1680 = vmatprep.subr.mxu0 0.0
        %1681 = vmatpush1.msra.mxu0 0.0
        %1682 = vmatprep.subr.mxu0 0.0
        %1683 = vmatpush1.msra.mxu0 0.0
        %1684 = vmatprep.subr.mxu0 0.0
        %1685 = vmatpush1.msra.mxu0 0.0
        %1686 = vmatprep.mubr.f32.mxu0 0.0
        %1687 = vmatmul.mubr.f32.gmra.mrb[0].mxu0 %v1615
        %v1688 = vpop.f32.mrb[0].mxu0
        %v1689 = vadd.f32 0.0, %v1688
        %v1690 = vpop.f32.mrb[0].mxu0
        %v1691 = vadd.f32 0.0, %v1690
        %1692 = vdwg.mxu0
        %1693 = vmatprep.subr.mxu0 %v1377
        %1694 = vmatpush1.msra.mxu0 %v1376
        %1695 = vmatprep.subr.mxu0 %v1381
        %1696 = vmatpush1.msra.mxu0 %v1380
        %1697 = vmatprep.subr.mxu0 %v1385
        %1698 = vmatpush1.msra.mxu0 %v1384
        %1699 = vmatprep.subr.mxu0 %v1389
        %1700 = vmatpush1.msra.mxu0 %v1388
        %1701 = vmatprep.subr.mxu0 %v1393
        %1702 = vmatpush1.msra.mxu0 %v1392
        %1703 = vmatprep.subr.mxu0 %v1397
        %1704 = vmatpush1.msra.mxu0 %v1396
        %1705 = vmatprep.subr.mxu0 %v1401
        %1706 = vmatpush1.msra.mxu0 %v1400
        %1707 = vmatprep.subr.mxu0 %v1405
        %1708 = vmatpush1.msra.mxu0 %v1404
        %1709 = vmatprep.subr.mxu0 %v1409
        %1710 = vmatpush1.msra.mxu0 %v1408
        %1711 = vmatprep.subr.mxu0 %v1413
        %1712 = vmatpush1.msra.mxu0 %v1412
        %1713 = vmatprep.subr.mxu0 %v1417
        %1714 = vmatpush1.msra.mxu0 %v1416
        %1715 = vmatprep.subr.mxu0 %v1421
        %1716 = vmatpush1.msra.mxu0 %v1420
        %1717 = vmatprep.subr.mxu0 %v1425
        %1718 = vmatpush1.msra.mxu0 %v1424
        %1719 = vmatprep.subr.mxu0 %v1429
        %1720 = vmatpush1.msra.mxu0 %v1428
        %1721 = vmatprep.subr.mxu0 %v1433
        %1722 = vmatpush1.msra.mxu0 %v1432
        %1723 = vmatprep.subr.mxu0 %v1437
        %1724 = vmatpush1.msra.mxu0 %v1436
        %1725 = vmatprep.subr.mxu0 0.0
        %1726 = vmatpush1.msra.mxu0 0.0
        %1727 = vmatprep.subr.mxu0 0.0
        %1728 = vmatpush1.msra.mxu0 0.0
        %1729 = vmatprep.subr.mxu0 0.0
        %1730 = vmatpush1.msra.mxu0 0.0
        %1731 = vmatprep.subr.mxu0 0.0
        %1732 = vmatpush1.msra.mxu0 0.0
        %1733 = vmatprep.subr.mxu0 0.0
        %1734 = vmatpush1.msra.mxu0 0.0
        %1735 = vmatprep.subr.mxu0 0.0
        %1736 = vmatpush1.msra.mxu0 0.0
        %1737 = vmatprep.subr.mxu0 0.0
        %1738 = vmatpush1.msra.mxu0 0.0
        %1739 = vmatprep.subr.mxu0 0.0
        %1740 = vmatpush1.msra.mxu0 0.0
        %1741 = vmatprep.subr.mxu0 0.0
        %1742 = vmatpush1.msra.mxu0 0.0
        %1743 = vmatprep.subr.mxu0 0.0
        %1744 = vmatpush1.msra.mxu0 0.0
        %1745 = vmatprep.subr.mxu0 0.0
        %1746 = vmatpush1.msra.mxu0 0.0
        %1747 = vmatprep.subr.mxu0 0.0
        %1748 = vmatpush1.msra.mxu0 0.0
        %1749 = vmatprep.subr.mxu0 0.0
        %1750 = vmatpush1.msra.mxu0 0.0
        %1751 = vmatprep.subr.mxu0 0.0
        %1752 = vmatpush1.msra.mxu0 0.0
        %1753 = vmatprep.subr.mxu0 0.0
        %1754 = vmatpush1.msra.mxu0 0.0
        %1755 = vmatprep.subr.mxu0 0.0
        %1756 = vmatpush1.msra.mxu0 0.0
        %1757 = vmatprep.mubr.f32.mxu0 0.0
        %1758 = vmatmul.mubr.f32.gmra.mrb[0].mxu0 %v1615
        %v1759 = vpop.f32.mrb[0].mxu0
        %v1760 = vadd.f32 0.0, %v1759
        %v1761 = vpop.f32.mrb[0].mxu0
        %v1762 = vadd.f32 0.0, %v1761
        %1763 = vdwg.mxu0
        %v1764 = vadd.f32 %v1618, %v1689
        %v1765 = vadd.f32 %v1619, %v1691
        %v1766 = vadd.f32 %v1620, %v1760
        %v1767 = vadd.f32 %v1621, %v1762
        %v1768 = vxor.u32 %v1764, 2147483648
        %v1769 = vmul.f32 %v1768, 1.442695
        %v1770 = vpow.pop %v1769
        %v1771 = vadd.f32 %v1770, 1.0
        %v1772 = vrcp.pop %v1771
        %v1773 = vmul.f32 1.0, %v1772
        %v1774 = vxor.u32 %v1765, 2147483648
        %v1775 = vmul.f32 %v1774, 1.442695
        %v1776 = vpow.pop %v1775
        %v1777 = vadd.f32 %v1776, 1.0
        %v1778 = vrcp.pop %v1777
        %v1779 = vmul.f32 1.0, %v1778
        %v1780 = vtanh.pop %v1766
        %v1781 = vxor.u32 %v1767, 2147483648
        %v1782 = vmul.f32 %v1781, 1.442695
        %v1783 = vpow.pop %v1782
        %v1784 = vadd.f32 %v1783, 1.0
        %v1785 = vrcp.pop %v1784
        %v1786 = vmul.f32 1.0, %v1785
        %v1787 = vmul.f32 %v1779, %v1613
        %v1788 = vmul.f32 %v1773, %v1780
        %v1789 = vadd.f32 %v1787, %v1788
        %v1790 = vtanh.pop %v1789
        %v1791 = vmul.f32 %v1786, %v1790
        %s1792 = scalar_lea.vmem %s305, 8 [#allocation14]
        %1793 = vst [vmem:[%s1792] sm:$0xff] %v1791
        %s1794 = scalar_lea.vmem [#allocation5], 64
        %v1795 = vld [vmem:[%s1794] sm:$0xff]
        %v1796 = vld [vmem:[%s1794 + $0x8] sm:$0xff]
        %v1797 = vld [vmem:[%s1794 + $0x10] sm:$0xff]
        %v1798 = vld [vmem:[%s1794 + $0x18] sm:$0xff]
        %1799 = vmatprep.subr.mxu0 %v1375
        %1800 = vmatpush1.msra.mxu0 %v1374
        %1801 = vmatprep.subr.mxu0 %v1379
        %1802 = vmatpush1.msra.mxu0 %v1378
        %1803 = vmatprep.subr.mxu0 %v1383
        %1804 = vmatpush1.msra.mxu0 %v1382
        %1805 = vmatprep.subr.mxu0 %v1387
        %1806 = vmatpush1.msra.mxu0 %v1386
        %1807 = vmatprep.subr.mxu0 %v1391
        %1808 = vmatpush1.msra.mxu0 %v1390
        %1809 = vmatprep.subr.mxu0 %v1395
        %1810 = vmatpush1.msra.mxu0 %v1394
        %1811 = vmatprep.subr.mxu0 %v1399
        %1812 = vmatpush1.msra.mxu0 %v1398
        %1813 = vmatprep.subr.mxu0 %v1403
        %1814 = vmatpush1.msra.mxu0 %v1402
        %1815 = vmatprep.subr.mxu0 %v1407
        %1816 = vmatpush1.msra.mxu0 %v1406
        %1817 = vmatprep.subr.mxu0 %v1411
        %1818 = vmatpush1.msra.mxu0 %v1410
        %1819 = vmatprep.subr.mxu0 %v1415
        %1820 = vmatpush1.msra.mxu0 %v1414
        %1821 = vmatprep.subr.mxu0 %v1419
        %1822 = vmatpush1.msra.mxu0 %v1418
        %1823 = vmatprep.subr.mxu0 %v1423
        %1824 = vmatpush1.msra.mxu0 %v1422
        %1825 = vmatprep.subr.mxu0 %v1427
        %1826 = vmatpush1.msra.mxu0 %v1426
        %1827 = vmatprep.subr.mxu0 %v1431
        %1828 = vmatpush1.msra.mxu0 %v1430
        %1829 = vmatprep.subr.mxu0 %v1435
        %1830 = vmatpush1.msra.mxu0 %v1434
        %1831 = vmatprep.subr.mxu0 0.0
        %1832 = vmatpush1.msra.mxu0 0.0
        %1833 = vmatprep.subr.mxu0 0.0
        %1834 = vmatpush1.msra.mxu0 0.0
        %1835 = vmatprep.subr.mxu0 0.0
        %1836 = vmatpush1.msra.mxu0 0.0
        %1837 = vmatprep.subr.mxu0 0.0
        %1838 = vmatpush1.msra.mxu0 0.0
        %1839 = vmatprep.subr.mxu0 0.0
        %1840 = vmatpush1.msra.mxu0 0.0
        %1841 = vmatprep.subr.mxu0 0.0
        %1842 = vmatpush1.msra.mxu0 0.0
        %1843 = vmatprep.subr.mxu0 0.0
        %1844 = vmatpush1.msra.mxu0 0.0
        %1845 = vmatprep.subr.mxu0 0.0
        %1846 = vmatpush1.msra.mxu0 0.0
        %1847 = vmatprep.subr.mxu0 0.0
        %1848 = vmatpush1.msra.mxu0 0.0
        %1849 = vmatprep.subr.mxu0 0.0
        %1850 = vmatpush1.msra.mxu0 0.0
        %1851 = vmatprep.subr.mxu0 0.0
        %1852 = vmatpush1.msra.mxu0 0.0
        %1853 = vmatprep.subr.mxu0 0.0
        %1854 = vmatpush1.msra.mxu0 0.0
        %1855 = vmatprep.subr.mxu0 0.0
        %1856 = vmatpush1.msra.mxu0 0.0
        %1857 = vmatprep.subr.mxu0 0.0
        %1858 = vmatpush1.msra.mxu0 0.0
        %1859 = vmatprep.subr.mxu0 0.0
        %1860 = vmatpush1.msra.mxu0 0.0
        %1861 = vmatprep.subr.mxu0 0.0
        %1862 = vmatpush1.msra.mxu0 0.0
        %1863 = vmatprep.mubr.f32.mxu0 0.0
        %1864 = vmatmul.mubr.f32.gmra.mrb[0].mxu0 %v1791
        %v1865 = vpop.f32.mrb[0].mxu0
        %v1866 = vadd.f32 0.0, %v1865
        %v1867 = vpop.f32.mrb[0].mxu0
        %v1868 = vadd.f32 0.0, %v1867
        %1869 = vdwg.mxu0
        %1870 = vmatprep.subr.mxu0 %v1377
        %1871 = vmatpush1.msra.mxu0 %v1376
        %1872 = vmatprep.subr.mxu0 %v1381
        %1873 = vmatpush1.msra.mxu0 %v1380
        %1874 = vmatprep.subr.mxu0 %v1385
        %1875 = vmatpush1.msra.mxu0 %v1384
        %1876 = vmatprep.subr.mxu0 %v1389
        %1877 = vmatpush1.msra.mxu0 %v1388
        %1878 = vmatprep.subr.mxu0 %v1393
        %1879 = vmatpush1.msra.mxu0 %v1392
        %1880 = vmatprep.subr.mxu0 %v1397
        %1881 = vmatpush1.msra.mxu0 %v1396
        %1882 = vmatprep.subr.mxu0 %v1401
        %1883 = vmatpush1.msra.mxu0 %v1400
        %1884 = vmatprep.subr.mxu0 %v1405
        %1885 = vmatpush1.msra.mxu0 %v1404
        %1886 = vmatprep.subr.mxu0 %v1409
        %1887 = vmatpush1.msra.mxu0 %v1408
        %1888 = vmatprep.subr.mxu0 %v1413
        %1889 = vmatpush1.msra.mxu0 %v1412
        %1890 = vmatprep.subr.mxu0 %v1417
        %1891 = vmatpush1.msra.mxu0 %v1416
        %1892 = vmatprep.subr.mxu0 %v1421
        %1893 = vmatpush1.msra.mxu0 %v1420
        %1894 = vmatprep.subr.mxu0 %v1425
        %1895 = vmatpush1.msra.mxu0 %v1424
        %1896 = vmatprep.subr.mxu0 %v1429
        %1897 = vmatpush1.msra.mxu0 %v1428
        %1898 = vmatprep.subr.mxu0 %v1433
        %1899 = vmatpush1.msra.mxu0 %v1432
        %1900 = vmatprep.subr.mxu0 %v1437
        %1901 = vmatpush1.msra.mxu0 %v1436
        %1902 = vmatprep.subr.mxu0 0.0
        %1903 = vmatpush1.msra.mxu0 0.0
        %1904 = vmatprep.subr.mxu0 0.0
        %1905 = vmatpush1.msra.mxu0 0.0
        %1906 = vmatprep.subr.mxu0 0.0
        %1907 = vmatpush1.msra.mxu0 0.0
        %1908 = vmatprep.subr.mxu0 0.0
        %1909 = vmatpush1.msra.mxu0 0.0
        %1910 = vmatprep.subr.mxu0 0.0
        %1911 = vmatpush1.msra.mxu0 0.0
        %1912 = vmatprep.subr.mxu0 0.0
        %1913 = vmatpush1.msra.mxu0 0.0
        %1914 = vmatprep.subr.mxu0 0.0
        %1915 = vmatpush1.msra.mxu0 0.0
        %1916 = vmatprep.subr.mxu0 0.0
        %1917 = vmatpush1.msra.mxu0 0.0
        %1918 = vmatprep.subr.mxu0 0.0
        %1919 = vmatpush1.msra.mxu0 0.0
        %1920 = vmatprep.subr.mxu0 0.0
        %1921 = vmatpush1.msra.mxu0 0.0
        %1922 = vmatprep.subr.mxu0 0.0
        %1923 = vmatpush1.msra.mxu0 0.0
        %1924 = vmatprep.subr.mxu0 0.0
        %1925 = vmatpush1.msra.mxu0 0.0
        %1926 = vmatprep.subr.mxu0 0.0
        %1927 = vmatpush1.msra.mxu0 0.0
        %1928 = vmatprep.subr.mxu0 0.0
        %1929 = vmatpush1.msra.mxu0 0.0
        %1930 = vmatprep.subr.mxu0 0.0
        %1931 = vmatpush1.msra.mxu0 0.0
        %1932 = vmatprep.subr.mxu0 0.0
        %1933 = vmatpush1.msra.mxu0 0.0
        %1934 = vmatprep.mubr.f32.mxu0 0.0
        %1935 = vmatmul.mubr.f32.gmra.mrb[0].mxu0 %v1791
        %v1936 = vpop.f32.mrb[0].mxu0
        %v1937 = vadd.f32 0.0, %v1936
        %v1938 = vpop.f32.mrb[0].mxu0
        %v1939 = vadd.f32 0.0, %v1938
        %1940 = vdwg.mxu0
        %v1941 = vadd.f32 %v1795, %v1866
        %v1942 = vadd.f32 %v1796, %v1868
        %v1943 = vadd.f32 %v1797, %v1937
        %v1944 = vadd.f32 %v1798, %v1939
        %v1945 = vxor.u32 %v1941, 2147483648
        %v1946 = vmul.f32 %v1945, 1.442695
        %v1947 = vpow.pop %v1946
        %v1948 = vadd.f32 %v1947, 1.0
        %v1949 = vrcp.pop %v1948
        %v1950 = vmul.f32 1.0, %v1949
        %v1951 = vxor.u32 %v1942, 2147483648
        %v1952 = vmul.f32 %v1951, 1.442695
        %v1953 = vpow.pop %v1952
        %v1954 = vadd.f32 %v1953, 1.0
        %v1955 = vrcp.pop %v1954
        %v1956 = vmul.f32 1.0, %v1955
        %v1957 = vtanh.pop %v1943
        %v1958 = vxor.u32 %v1944, 2147483648
        %v1959 = vmul.f32 %v1958, 1.442695
        %v1960 = vpow.pop %v1959
        %v1961 = vadd.f32 %v1960, 1.0
        %v1962 = vrcp.pop %v1961
        %v1963 = vmul.f32 1.0, %v1962
        %v1964 = vmul.f32 %v1956, %v1789
        %v1965 = vmul.f32 %v1950, %v1957
        %v1966 = vadd.f32 %v1964, %v1965
        %v1967 = vtanh.pop %v1966
        %v1968 = vmul.f32 %v1963, %v1967
        %s1969 = scalar_lea.vmem %s305, 16 [#allocation14]
        %1970 = vst [vmem:[%s1969] sm:$0xff] %v1968
        %s1971 = scalar_lea.vmem [#allocation5], 96
        %v1972 = vld [vmem:[%s1971] sm:$0xff]
        %v1973 = vld [vmem:[%s1971 + $0x8] sm:$0xff]
        %v1974 = vld [vmem:[%s1971 + $0x10] sm:$0xff]
        %v1975 = vld [vmem:[%s1971 + $0x18] sm:$0xff]
        %1976 = vmatprep.subr.mxu0 %v1375
        %1977 = vmatpush1.msra.mxu0 %v1374
        %1978 = vmatprep.subr.mxu0 %v1379
        %1979 = vmatpush1.msra.mxu0 %v1378
        %1980 = vmatprep.subr.mxu0 %v1383
        %1981 = vmatpush1.msra.mxu0 %v1382
        %1982 = vmatprep.subr.mxu0 %v1387
        %1983 = vmatpush1.msra.mxu0 %v1386
        %1984 = vmatprep.subr.mxu0 %v1391
        %1985 = vmatpush1.msra.mxu0 %v1390
        %1986 = vmatprep.subr.mxu0 %v1395
        %1987 = vmatpush1.msra.mxu0 %v1394
        %1988 = vmatprep.subr.mxu0 %v1399
        %1989 = vmatpush1.msra.mxu0 %v1398
        %1990 = vmatprep.subr.mxu0 %v1403
        %1991 = vmatpush1.msra.mxu0 %v1402
        %1992 = vmatprep.subr.mxu0 %v1407
        %1993 = vmatpush1.msra.mxu0 %v1406
        %1994 = vmatprep.subr.mxu0 %v1411
        %1995 = vmatpush1.msra.mxu0 %v1410
        %1996 = vmatprep.subr.mxu0 %v1415
        %1997 = vmatpush1.msra.mxu0 %v1414
        %1998 = vmatprep.subr.mxu0 %v1419
        %1999 = vmatpush1.msra.mxu0 %v1418
        %2000 = vmatprep.subr.mxu0 %v1423
        %2001 = vmatpush1.msra.mxu0 %v1422
        %2002 = vmatprep.subr.mxu0 %v1427
        %2003 = vmatpush1.msra.mxu0 %v1426
        %2004 = vmatprep.subr.mxu0 %v1431
        %2005 = vmatpush1.msra.mxu0 %v1430
        %2006 = vmatprep.subr.mxu0 %v1435
        %2007 = vmatpush1.msra.mxu0 %v1434
        %2008 = vmatprep.subr.mxu0 0.0
        %2009 = vmatpush1.msra.mxu0 0.0
        %2010 = vmatprep.subr.mxu0 0.0
        %2011 = vmatpush1.msra.mxu0 0.0
        %2012 = vmatprep.subr.mxu0 0.0
        %2013 = vmatpush1.msra.mxu0 0.0
        %2014 = vmatprep.subr.mxu0 0.0
        %2015 = vmatpush1.msra.mxu0 0.0
        %2016 = vmatprep.subr.mxu0 0.0
        %2017 = vmatpush1.msra.mxu0 0.0
        %2018 = vmatprep.subr.mxu0 0.0
        %2019 = vmatpush1.msra.mxu0 0.0
        %2020 = vmatprep.subr.mxu0 0.0
        %2021 = vmatpush1.msra.mxu0 0.0
        %2022 = vmatprep.subr.mxu0 0.0
        %2023 = vmatpush1.msra.mxu0 0.0
        %2024 = vmatprep.subr.mxu0 0.0
        %2025 = vmatpush1.msra.mxu0 0.0
        %2026 = vmatprep.subr.mxu0 0.0
        %2027 = vmatpush1.msra.mxu0 0.0
        %2028 = vmatprep.subr.mxu0 0.0
        %2029 = vmatpush1.msra.mxu0 0.0
        %2030 = vmatprep.subr.mxu0 0.0
        %2031 = vmatpush1.msra.mxu0 0.0
        %2032 = vmatprep.subr.mxu0 0.0
        %2033 = vmatpush1.msra.mxu0 0.0
        %2034 = vmatprep.subr.mxu0 0.0
        %2035 = vmatpush1.msra.mxu0 0.0
        %2036 = vmatprep.subr.mxu0 0.0
        %2037 = vmatpush1.msra.mxu0 0.0
        %2038 = vmatprep.subr.mxu0 0.0
        %2039 = vmatpush1.msra.mxu0 0.0
        %2040 = vmatprep.mubr.f32.mxu0 0.0
        %2041 = vmatmul.mubr.f32.gmra.mrb[0].mxu0 %v1968
        %v2042 = vpop.f32.mrb[0].mxu0
        %v2043 = vadd.f32 0.0, %v2042
        %v2044 = vpop.f32.mrb[0].mxu0
        %v2045 = vadd.f32 0.0, %v2044
        %2046 = vdwg.mxu0
        %2047 = vmatprep.subr.mxu0 %v1377
        %2048 = vmatpush1.msra.mxu0 %v1376
        %2049 = vmatprep.subr.mxu0 %v1381
        %2050 = vmatpush1.msra.mxu0 %v1380
        %2051 = vmatprep.subr.mxu0 %v1385
        %2052 = vmatpush1.msra.mxu0 %v1384
        %2053 = vmatprep.subr.mxu0 %v1389
        %2054 = vmatpush1.msra.mxu0 %v1388
        %2055 = vmatprep.subr.mxu0 %v1393
        %2056 = vmatpush1.msra.mxu0 %v1392
        %2057 = vmatprep.subr.mxu0 %v1397
        %2058 = vmatpush1.msra.mxu0 %v1396
        %2059 = vmatprep.subr.mxu0 %v1401
        %2060 = vmatpush1.msra.mxu0 %v1400
        %2061 = vmatprep.subr.mxu0 %v1405
        %2062 = vmatpush1.msra.mxu0 %v1404
        %2063 = vmatprep.subr.mxu0 %v1409
        %2064 = vmatpush1.msra.mxu0 %v1408
        %2065 = vmatprep.subr.mxu0 %v1413
        %2066 = vmatpush1.msra.mxu0 %v1412
        %2067 = vmatprep.subr.mxu0 %v1417
        %2068 = vmatpush1.msra.mxu0 %v1416
        %2069 = vmatprep.subr.mxu0 %v1421
        %2070 = vmatpush1.msra.mxu0 %v1420
        %2071 = vmatprep.subr.mxu0 %v1425
        %2072 = vmatpush1.msra.mxu0 %v1424
        %2073 = vmatprep.subr.mxu0 %v1429
        %2074 = vmatpush1.msra.mxu0 %v1428
        %2075 = vmatprep.subr.mxu0 %v1433
        %2076 = vmatpush1.msra.mxu0 %v1432
        %2077 = vmatprep.subr.mxu0 %v1437
        %2078 = vmatpush1.msra.mxu0 %v1436
        %2079 = vmatprep.subr.mxu0 0.0
        %2080 = vmatpush1.msra.mxu0 0.0
        %2081 = vmatprep.subr.mxu0 0.0
        %2082 = vmatpush1.msra.mxu0 0.0
        %2083 = vmatprep.subr.mxu0 0.0
        %2084 = vmatpush1.msra.mxu0 0.0
        %2085 = vmatprep.subr.mxu0 0.0
        %2086 = vmatpush1.msra.mxu0 0.0
        %2087 = vmatprep.subr.mxu0 0.0
        %2088 = vmatpush1.msra.mxu0 0.0
        %2089 = vmatprep.subr.mxu0 0.0
        %2090 = vmatpush1.msra.mxu0 0.0
        %2091 = vmatprep.subr.mxu0 0.0
        %2092 = vmatpush1.msra.mxu0 0.0
        %2093 = vmatprep.subr.mxu0 0.0
        %2094 = vmatpush1.msra.mxu0 0.0
        %2095 = vmatprep.subr.mxu0 0.0
        %2096 = vmatpush1.msra.mxu0 0.0
        %2097 = vmatprep.subr.mxu0 0.0
        %2098 = vmatpush1.msra.mxu0 0.0
        %2099 = vmatprep.subr.mxu0 0.0
        %2100 = vmatpush1.msra.mxu0 0.0
        %2101 = vmatprep.subr.mxu0 0.0
        %2102 = vmatpush1.msra.mxu0 0.0
        %2103 = vmatprep.subr.mxu0 0.0
        %2104 = vmatpush1.msra.mxu0 0.0
        %2105 = vmatprep.subr.mxu0 0.0
        %2106 = vmatpush1.msra.mxu0 0.0
        %2107 = vmatprep.subr.mxu0 0.0
        %2108 = vmatpush1.msra.mxu0 0.0
        %2109 = vmatprep.subr.mxu0 0.0
        %2110 = vmatpush1.msra.mxu0 0.0
        %2111 = vmatprep.mubr.f32.mxu0 0.0
        %2112 = vmatmul.mubr.f32.gmra.mrb[0].mxu0 %v1968
        %v2113 = vpop.f32.mrb[0].mxu0
        %v2114 = vadd.f32 0.0, %v2113
        %v2115 = vpop.f32.mrb[0].mxu0
        %v2116 = vadd.f32 0.0, %v2115
        %2117 = vdwg.mxu0
        %v2118 = vadd.f32 %v1972, %v2043
        %v2119 = vadd.f32 %v1973, %v2045
        %v2120 = vadd.f32 %v1974, %v2114
        %v2121 = vadd.f32 %v1975, %v2116
        %v2122 = vxor.u32 %v2118, 2147483648
        %v2123 = vmul.f32 %v2122, 1.442695
        %v2124 = vpow.pop %v2123
        %v2125 = vadd.f32 %v2124, 1.0
        %v2126 = vrcp.pop %v2125
        %v2127 = vmul.f32 1.0, %v2126
        %v2128 = vxor.u32 %v2119, 2147483648
        %v2129 = vmul.f32 %v2128, 1.442695
        %v2130 = vpow.pop %v2129
        %v2131 = vadd.f32 %v2130, 1.0
        %v2132 = vrcp.pop %v2131
        %v2133 = vmul.f32 1.0, %v2132
        %v2134 = vtanh.pop %v2120
        %v2135 = vxor.u32 %v2121, 2147483648
        %v2136 = vmul.f32 %v2135, 1.442695
        %v2137 = vpow.pop %v2136
        %v2138 = vadd.f32 %v2137, 1.0
        %v2139 = vrcp.pop %v2138
        %v2140 = vmul.f32 1.0, %v2139
        %v2141 = vmul.f32 %v2133, %v1966
        %v2142 = vmul.f32 %v2127, %v2134
        %v2143 = vadd.f32 %v2141, %v2142
        %v2144 = vtanh.pop %v2143
        %v2145 = vmul.f32 %v2140, %v2144
        %s2146 = scalar_lea.vmem %s305, 24 [#allocation14]
        %2147 = vst [vmem:[%s2146] sm:$0xff] %v2145
        %2148 = vst [vmem:[%s1438] sm:$0xff] %v2145
        %2149 = vst [vmem:[%s1440] sm:$0xff] %v2143
        %s2150 = sand.u32 %s158, 1
        %s2151 = scalar_lea.sflag [#allocation8], %s2150
        %s2152 = sand.u32 %s158, 1
        %s2153 = smul.addr %s2152, 32
        %s2154 = scalar_lea.vmem [#allocation14], %s2153
        // Predicated region
        $region61: #{tpu_custom_call.1} parent=39 // pred_check
          %p2155 = pneg %p168
        $region62: #{tpu_custom_call.1} parent=39 // pred_check_branch
          %2157 = sbr.rel (%p2155) target = $region64
        $region63: #{tpu_custom_call.1} parent=39 // pred_region
          %s2158 = smul.u32 4, %s29
          %s2160 = ssub.s32 512, 512
          %2161 = vsyncadd %s2151, %s2160
          %s2162 = sadd.s32 %s28, %s2158
          %s2163 = smul.addr %s2162, 128
          %s2164 = scalar_lea.hbm %s5, %s2163
          %s2165 = sshll.u32 %s2154, 4
          %s2166 = int_to_ptr.vmem [resolvable:$true] %s2165
          %2171 = dma.vmem_to_hbm [thread:$0]  %s2166, 512, %s2164, %s2151, 128, 128, 8
        $region64: #{tpu_custom_call.1} parent=39 // pred_fallthru
          _
      $region40: #{tpu_custom_call.1} parent=5 // pred_fallthru
        _
      %p2172 = scmp.le.s32.totalorder 2, %s19
      // Predicated region
      $region65: #{tpu_custom_call.1} parent=5 // pred_check
        %p2173 = pneg %p2172
      $region66: #{tpu_custom_call.1} parent=5 // pred_check_branch
        %2175 = sbr.rel (%p2173) target = $region68
      $region67: #{tpu_custom_call.1} parent=5 // pred_region
        %s2176 = ssub.s32 %s19, 2
        // Predicated region
        $region69: #{tpu_custom_call.1} parent=67 // pred_check
          %p2177 = pneg %p174
        $region70: #{tpu_custom_call.1} parent=67 // pred_check_branch
          %2179 = sbr.rel (%p2177) target = $region72
        $region71: #{tpu_custom_call.1} parent=67 // pred_region
          %s2180 = sand.u32 %s159, 1
          %s2181 = scalar_lea.sflag [#allocation8], %s2180
          %s2182 = sand.u32 %s159, 1
          %s2183 = smul.addr %s2182, 32
          %s2184 = scalar_lea.vmem [#allocation14], %s2183
          %2185 = dma.done %s2181, 512
        $region72: #{tpu_custom_call.1} parent=67 // pred_fallthru
          _
      $region68: #{tpu_custom_call.1} parent=5 // pred_fallthru
        _
    $region6: #{tpu_custom_call.1} parent=1 // loop_footer
      %s23 = sadd.s32 1, %s19
    $region7: #{tpu_custom_call.1} parent=1 // loop_footer_branch
      %18 = sbr.rel target = $region3
    $region8: #{tpu_custom_call.1} parent=1 // loop_exit
      _
    %2186 = vsyncpa [#allocation7], 1
    %s2187 = scalar_lea.sflag [#allocation7], 1
    %2188 = vsyncpa %s2187, 1
    %2189 = vsyncpa [#allocation10], 1
    %2190 = vsyncpa [#allocation13], 1
    %2191 = vsyncpa [#allocation8], 1
    %s2192 = scalar_lea.sflag [#allocation8], 1
    %2193 = vsyncpa %s2192, 1

</llo_original>
